<compile_context>
chip_gen: v7x
topology: tpu7x:2x2x1
jax: 0.10.0
libtpu: 0.0.40
codegen_flags: <defaults>
</compile_context>

<pallas_src>
import functools

import jax
import jax.numpy as jnp
from jax.experimental import pallas as pl
from jax.experimental.pallas import tpu as pltpu

# --- synthetic config ------------------------------------------------------
FC_DIM = 32          # config['model']['fc_dim']
FC_DIM_BRANCH = 16   # config['model']['fc_dim_branch'] (lift / val_lift are
                     # defined in __init__ but never used in forward)
N_LAYER = 2          # config['model']['N_layer'] -> branch = 3 Linear layers

B, M, N = 2, 16, 8   # batch, #collocation points, #boundary points
LANES = 128          # vreg lane width


# --- Pallas kernel ---------------------------------------------------------
def dcon_plate_kernel(x_ref, y_ref, px_ref, py_ref, pu_ref,
                      wb1P_ref, wsqP_ref, w1tP_ref, w2tP_ref,
                      w3tTP_ref, b3P_ref, biasP_ref, gmask_ref,
                      out_ref, *, mm_dtype):
    f32 = jnp.float32
    fcP = wsqP_ref.shape[-1]            # 128 (lane-packed feature width)
    fc = w3tTP_ref.shape[0]             # model fc_dim
    pack_b = fcP // fc                  # boundary rows packed per 128-lane row
    pack_t = fcP // (2 * fc)            # collocation rows packed per vreg row
    bb, m = x_ref.shape
    n = px_ref.shape[1]
    m2, nq = m // pack_t, n // pack_b

    def mm(a, w):                       # MXU matmul (bf16 knob for v6e/v7x)
        return jnp.dot(a.astype(mm_dtype), w.astype(mm_dtype),
                       preferred_element_type=f32)

    # ---- branch MLP, 128-lane packed: pack_b boundary rows share a vreg row
    wb1P = wb1P_ref[...]                                   # (3, pack_b, 128)
    h = biasP_ref[0:1, :]                                  # (1, 128) -> bcast
    for g in range(pack_b):                                # layer 1 as VPU FMAs
        sl = slice(g * nq, (g + 1) * nq)
        h = (h + px_ref[:, sl][..., None] * wb1P[0, g]
               + py_ref[:, sl][..., None] * wb1P[1, g]
               + pu_ref[:, sl][..., None] * wb1P[2, g])    # (bb, nq, 128)
    h = jnp.tanh(h).reshape(bb * nq, fcP)
    h = jnp.tanh(mm(h, wsqP_ref[0]) + biasP_ref[1:2, :])   # 4-copy block-diag
    h = mm(h, wsqP_ref[1]) + biasP_ref[2:3, :]
    # per-batch amax over boundary rows: packed-row max, then fold lane groups
    enc = jnp.max(h.reshape(bb, nq, fcP), axis=1)          # (bb, 128)
    width = fcP
    while width > fc:
        width //= 2
        enc = jnp.maximum(enc[:, :width], enc[:, width:])  # -> (bb, fc)

    # ---- folded final layer: mean((t@w3+b3)*enc) = t.(w3^T enc)/fc + (b3.enc)/fc
    w3eff = jnp.dot(enc, w3tTP_ref[...], preferred_element_type=f32)  # (bb,128)
    beff = jnp.dot(enc, b3P_ref[...], preferred_element_type=f32)     # (bb, ng)
    enc_t = jnp.concatenate([enc] * (fcP // fc), axis=-1)  # (bb, 128) gate

    # ---- fused u||v trunk heads, 128-lane packed (pack_t rows per vreg row)
    w1tP = w1tP_ref[...]                                   # (2, pack_t, 128)
    t = biasP_ref[3:4, :]
    for g in range(pack_t):                                # layer 1 as VPU FMAs
        sl = slice(g * m2, (g + 1) * m2)
        t = (t + x_ref[:, sl][..., None] * w1tP[0, g]
               + y_ref[:, sl][..., None] * w1tP[1, g])     # (bb, m2, 128)
    gate = enc_t[:, None, :]
    t = jnp.tanh(t) * gate
    t = jnp.tanh(mm(t.reshape(bb * m2, fcP), w2tP_ref[...]) + biasP_ref[4:5, :])
    t = t.reshape(bb, m2, fcP) * gate                      # (bb, m2, 128)

    # final contraction on the MXU; output (batch, group, m2) keeps the
    # collocation axis lane-dense.  Groups are (u_lo, v_lo, u_hi, v_hi).
    w3gate = w3eff[:, None, :] * gmask_ref[...][None]      # (bb, ng, 128)
    out = jnp.einsum('bol,bpl->bop', w3gate, t,
                     preferred_element_type=f32)           # (bb, ng, m2)
    out_ref[...] = out + beff[:, :, None]


# --- weight packing (wrapper-side glue, done once per call) ----------------
def pack_weights(weights, lanes=LANES):
    ws = [jnp.asarray(w, jnp.float32) for w in weights]
    (wb1, bb1, wb2, bb2, wb3, bb3,
     w1u, b1u, w2u, b2u, w3u, b3u,
     w1v, b1v, w2v, b2v, w3v, b3v) = ws
    fc = wb1.shape[1]
    assert lanes % (2 * fc) == 0, "fc_dim must divide 64 for 128-lane packing"
    pack_b = lanes // fc            # boundary rows packed per 128-lane row
    pack_t = lanes // (2 * fc)      # collocation rows packed per 128-lane row
    ng = 2 * pack_t                 # output groups: (u, v) x trunk lane groups

    def blockdiag(blocks):
        rows = sum(b.shape[0] for b in blocks)
        cols = sum(b.shape[1] for b in blocks)
        out = jnp.zeros((rows, cols), jnp.float32)
        r = c = 0
        for blk in blocks:
            out = out.at[r:r + blk.shape[0], c:c + blk.shape[1]].set(blk)
            r += blk.shape[0]
            c += blk.shape[1]
        return out

    def group_masked(w, copies):
        # (k, d) -> (k, copies, copies*d): copy g lives in lanes [g*d, (g+1)*d)
        k, d = w.shape
        out = jnp.zeros((k, copies, copies * d), jnp.float32)
        for g in range(copies):
            out = out.at[:, g, g * d:(g + 1) * d].set(w)
        return out

    def tile_vec(v, copies):
        return jnp.concatenate([v] * copies)

    # branch (layers 1..3), packed pack_b boundary rows -> 128 lanes
    wb1P = group_masked(wb1, pack_b)                       # (3, pack_b, 128)
    wsqP = jnp.stack([blockdiag([wb2] * pack_b),
                      blockdiag([wb3] * pack_b)])          # (2, 128, 128)

    # fused u||v trunk (layers 1..2), packed pack_t rows -> 128 lanes
    w1t = jnp.concatenate([w1u, w1v], axis=1)              # (2, 2fc)
    w1tP = group_masked(w1t, pack_t)                       # (2, pack_t, 128)
    w2tP = blockdiag([w2u, w2v] * pack_t)                  # (128, 128)

    # folded final layer (+ the mean's 1/fc) and its bias
    w3tT = jnp.concatenate([w3u.T, w3v.T], axis=1) / fc    # (fc, 2fc)
    w3tTP = jnp.concatenate([w3tT] * pack_t, axis=1)       # (fc, 128)
    b3P = jnp.stack([b3u, b3v] * pack_t, axis=1) / fc      # (fc, ng)

    # all small biases tiled to 128 lanes, stacked into one (5, 128) array
    biasP = jnp.stack([
        tile_vec(bb1, pack_b),
        tile_vec(bb2, pack_b),
        tile_vec(bb3, pack_b),
        tile_vec(jnp.concatenate([b1u, b1v]), pack_t),
        tile_vec(jnp.concatenate([b2u, b2v]), pack_t),
    ])                                                     # (5, 128)

    # 0/1 lane-group mask for the final (group, lane) contraction
    gmask = (jnp.arange(lanes)[None, :] // fc
             == jnp.arange(ng)[:, None]).astype(jnp.float32)  # (ng, 128)

    packed = [wb1P, wsqP, w1tP, w2tP, w3tTP, b3P, biasP, gmask]
    return packed, (pack_b, pack_t, ng)


# --- wrapper ---------------------------------------------------------------
def dcon_plate_forward(x_coor, y_coor, par, weights, block_b=None,
                       mm_dtype=jnp.float32):
    b_, m_ = x_coor.shape
    n_ = par.shape[1]
    packed, (pack_b, pack_t, ng) = pack_weights(weights)
    # TODO(synk): pad M / N up to the 128-lane packing factors for general sizes.
    assert m_ % pack_t == 0 and n_ % pack_b == 0
    m2 = m_ // pack_t

    # feed the three par columns directly (no lane-sparse (.,3) slab shipped)
    px, py, pu = par[..., 0], par[..., 1], par[..., 2]

    if block_b is None:
        # Sublane-aligned batch blocks: block_b must divide B and be either B
        # itself or a multiple of 8 (it is the second-to-last BlockSpec dim).
        aligned = [d for d in range(1, b_ + 1)
                   if b_ % d == 0 and (d == b_ or d % 8 == 0)]
        # keep the per-step working set to ~<=8k collocation/boundary rows
        # (128-lane f32 activations -> a few MiB, well inside the 32 MiB cap)
        cap = max(1, 8192 // max(m_, n_))
        under = [d for d in aligned if d <= cap]
        block_b = max(under) if under else min(aligned)
        # v7x megacore: prefer >=2 'parallel' grid steps when alignment allows
        if block_b == b_ and (b_ // 2) in aligned:
            block_b = b_ // 2
    assert b_ % block_b == 0
    grid = (b_ // block_b,)

    def full_spec(a):
        return pl.BlockSpec(a.shape, lambda i, _nd=a.ndim: (0,) * _nd)

    bm = pl.BlockSpec((block_b, m_), lambda i: (i, 0))
    bn = pl.BlockSpec((block_b, n_), lambda i: (i, 0))
    in_specs = [bm, bm, bn, bn, bn] + [full_spec(w) for w in packed]
    out_specs = pl.BlockSpec((block_b, ng, m2), lambda i: (i, 0, 0))
    out_shape = jax.ShapeDtypeStruct((b_, ng, m2), jnp.float32)

    fc = packed[4].shape[0]
    flops = int(2 * b_ * (2 * n_ * fc * fc + 4 * m_ * fc * fc + 4 * m_ * fc))
    transcendentals = int(b_ * (2 * n_ * fc + 4 * m_ * fc))
    bytes_accessed = int(4 * (b_ * (2 * m_ + 3 * n_ + ng * m2)
                              + sum(int(w.size) for w in packed) * grid[0]))

    out3 = pl.pallas_call(
        functools.partial(dcon_plate_kernel, mm_dtype=mm_dtype),
        grid=grid,
        in_specs=in_specs,
        out_specs=out_specs,
        out_shape=out_shape,
        compiler_params=pltpu.CompilerParams(
            dimension_semantics=("parallel",),
            vmem_limit_bytes=32 * 1024 * 1024),
        cost_estimate=pl.CostEstimate(flops=flops,
                                      transcendentals=transcendentals,
                                      bytes_accessed=bytes_accessed),
    )(x_coor, y_coor, px, py, pu, *packed)

    # unscramble the packed (batch, group, m2) layout: group 2g   -> u rows
    # [g*m2,(g+1)*m2), group 2g+1 -> v rows of the same chunk.
    u = jnp.concatenate([out3[:, 2 * g, :] for g in range(pack_t)], axis=-1)
    v = jnp.concatenate([out3[:, 2 * g + 1, :] for g in range(pack_t)], axis=-1)
    return u, v


# --- deterministic parameter init (torch.nn.Linear-style uniform) ----------
def init_linear(key, fan_in, fan_out):
    k1, k2 = jax.random.split(key)
    bound = 1.0 / float(fan_in) ** 0.5
    w = jax.random.uniform(k1, (fan_in, fan_out), jnp.float32, -bound, bound)
    b = jax.random.uniform(k2, (fan_out,), jnp.float32, -bound, bound)
    return w, b


def init_params(key):
    keys = jax.random.split(key, 9)
    wb1, bb1 = init_linear(keys[0], 3, FC_DIM)          # branch layer 0
    wb2, bb2 = init_linear(keys[1], FC_DIM, FC_DIM)     # branch hidden
    wb3, bb3 = init_linear(keys[2], FC_DIM, FC_DIM)     # branch final (no act)
    w1u, b1u = init_linear(keys[3], 2, FC_DIM)
    w2u, b2u = init_linear(keys[4], FC_DIM, FC_DIM)
    w3u, b3u = init_linear(keys[5], FC_DIM, FC_DIM)
    w1v, b1v = init_linear(keys[6], 2, FC_DIM)
    w2v, b2v = init_linear(keys[7], FC_DIM, FC_DIM)
    w3v, b3v = init_linear(keys[8], FC_DIM, FC_DIM)
    # lift / val_lift (3->FC_DIM_BRANCH, 1->FC_DIM_BRANCH) are unused in forward.
    return [wb1, bb1, wb2, bb2, wb3, bb3,
            w1u, b1u, w2u, b2u, w3u, b3u,
            w1v, b1v, w2v, b2v, w3v, b3v]


# --- pure-JAX reference (unfused, mirrors the PyTorch forward) --------------
def reference_forward(x_coor, y_coor, par, weights):
    (wb1, bb1, wb2, bb2, wb3, bb3,
     w1u, b1u, w2u, b2u, w3u, b3u,
     w1v, b1v, w2v, b2v, w3v, b3v) = weights
    mm = functools.partial(jnp.matmul, precision="highest")
    h = jnp.tanh(mm(par, wb1) + bb1)
    h = jnp.tanh(mm(h, wb2) + bb2)
    h = mm(h, wb3) + bb3
    enc = jnp.max(h, axis=1, keepdims=True)              # (B,1,FC_DIM)
    xy = jnp.concatenate([x_coor[..., None], y_coor[..., None]], -1)

    def head(w1, b1, w2, b2, w3, b3):
        t = jnp.tanh(mm(xy, w1) + b1) * enc
        t = jnp.tanh(mm(t, w2) + b2) * enc
        t = mm(t, w3) + b3
        return jnp.mean(t * enc, axis=-1)

    return (head(w1u, b1u, w2u, b2u, w3u, b3u),
            head(w1v, b1v, w2v, b2v, w3v, b3v))


if __name__ == "__main__":
    key = jax.random.PRNGKey(0)
    kx, ky, kp, kw = jax.random.split(key, 4)
    x_coor = jax.random.uniform(kx, (B, M), jnp.float32)
    y_coor = jax.random.uniform(ky, (B, M), jnp.float32)
    par = jax.random.uniform(kp, (B, N, 3), jnp.float32)
    weights = init_params(kw)

    u, v = dcon_plate_forward(x_coor, y_coor, par, weights)
    jax.block_until_ready((u, v))

    u_ref, v_ref = reference_forward(x_coor, y_coor, par, weights)
    assert u.shape == (B, M) and v.shape == (B, M)
    assert jnp.allclose(u, u_ref, atol=1e-5, rtol=1e-5)
    assert jnp.allclose(v, v_ref, atol=1e-5, rtol=1e-5)
    print("KERNEL_OK")
</pallas_src>

<mosaic_0001>
module attributes {stable_mosaic.version = 11 : i64} {
  func.func @dcon_plate_kernel(%arg0: i32, %arg1: memref<2x16xf32, #tpu.memory_space<vmem>>, %arg2: memref<2x16xf32, #tpu.memory_space<vmem>>, %arg3: memref<2x8xf32, #tpu.memory_space<vmem>>, %arg4: memref<2x8xf32, #tpu.memory_space<vmem>>, %arg5: memref<2x8xf32, #tpu.memory_space<vmem>>, %arg6: memref<3x4x128xf32, #tpu.memory_space<vmem>>, %arg7: memref<2x128x128xf32, #tpu.memory_space<vmem>>, %arg8: memref<2x2x128xf32, #tpu.memory_space<vmem>>, %arg9: memref<128x128xf32, #tpu.memory_space<vmem>>, %arg10: memref<32x128xf32, #tpu.memory_space<vmem>>, %arg11: memref<32x4xf32, #tpu.memory_space<vmem>>, %arg12: memref<5x128xf32, #tpu.memory_space<vmem>>, %arg13: memref<4x128xf32, #tpu.memory_space<vmem>>, %arg14: memref<2x4x8xf32, #tpu.memory_space<vmem>>) attributes {dimension_semantics = [#tpu.dimension_semantics<parallel>], iteration_bounds = array<i64: 1>, scalar_prefetch = 0 : i64, scratch_operands = 0 : i64, tpu.core_type = #tpu.core_type<tc>, window_params = [{transform_indices = @transform_0, window_bounds = array<i64: 2, 16>}, {transform_indices = @transform_1, window_bounds = array<i64: 2, 16>}, {transform_indices = @transform_2, window_bounds = array<i64: 2, 8>}, {transform_indices = @transform_3, window_bounds = array<i64: 2, 8>}, {transform_indices = @transform_4, window_bounds = array<i64: 2, 8>}, {pipeline_mode = #tpu.pipeline_mode<synchronous>, transform_indices = @transform_5, window_bounds = array<i64: 3, 4, 128>}, {pipeline_mode = #tpu.pipeline_mode<synchronous>, transform_indices = @transform_6, window_bounds = array<i64: 2, 128, 128>}, {pipeline_mode = #tpu.pipeline_mode<synchronous>, transform_indices = @transform_7, window_bounds = array<i64: 2, 2, 128>}, {pipeline_mode = #tpu.pipeline_mode<synchronous>, transform_indices = @transform_8, window_bounds = array<i64: 128, 128>}, {pipeline_mode = #tpu.pipeline_mode<synchronous>, transform_indices = @transform_9, window_bounds = array<i64: 32, 128>}, {pipeline_mode = #tpu.pipeline_mode<synchronous>, transform_indices = @transform_10, window_bounds = array<i64: 32, 4>}, {pipeline_mode = #tpu.pipeline_mode<synchronous>, transform_indices = @transform_11, window_bounds = array<i64: 5, 128>}, {pipeline_mode = #tpu.pipeline_mode<synchronous>, transform_indices = @transform_12, window_bounds = array<i64: 4, 128>}, {transform_indices = @transform_13, window_bounds = array<i64: 2, 4, 8>}]} {
    %c0 = arith.constant 0 : index
    %c0_0 = arith.constant 0 : index
    %c0_1 = arith.constant 0 : index
    %0 = vector.load %arg6[%c0, %c0_0, %c0_1] : memref<3x4x128xf32, #tpu.memory_space<vmem>>, vector<3x4x128xf32>
    %c0_2 = arith.constant 0 : index
    %c0_3 = arith.constant 0 : index
    %1 = vector.load %arg12[%c0_2, %c0_3] : memref<5x128xf32, #tpu.memory_space<vmem>>, vector<1x128xf32>
    %c0_4 = arith.constant 0 : index
    %c0_5 = arith.constant 0 : index
    %2 = vector.load %arg3[%c0_4, %c0_5] : memref<2x8xf32, #tpu.memory_space<vmem>>, vector<2x2xf32>
    %3 = vector.shape_cast %2 : vector<2x2xf32> to vector<2x2x1xf32>
    %4 = vector.extract_strided_slice %0 {offsets = [0, 0, 0], sizes = [1, 1, 128], strides = [1, 1, 1]} : vector<3x4x128xf32> to vector<1x1x128xf32>
    %5 = vector.shape_cast %4 : vector<1x1x128xf32> to vector<128xf32>
    %6 = vector.shape_cast %5 : vector<128xf32> to vector<1x1x128xf32>
    %7 = vector.broadcast %3 : vector<2x2x1xf32> to vector<2x2x128xf32>
    %8 = vector.broadcast %6 : vector<1x1x128xf32> to vector<2x2x128xf32>
    %9 = arith.mulf %7, %8 : vector<2x2x128xf32>
    %10 = vector.shape_cast %1 : vector<1x128xf32> to vector<1x1x128xf32>
    %11 = vector.broadcast %10 : vector<1x1x128xf32> to vector<2x2x128xf32>
    %12 = arith.addf %11, %9 : vector<2x2x128xf32>
    %c0_6 = arith.constant 0 : index
    %c0_7 = arith.constant 0 : index
    %13 = vector.load %arg4[%c0_6, %c0_7] : memref<2x8xf32, #tpu.memory_space<vmem>>, vector<2x2xf32>
    %14 = vector.shape_cast %13 : vector<2x2xf32> to vector<2x2x1xf32>
    %15 = vector.extract_strided_slice %0 {offsets = [1, 0, 0], sizes = [1, 1, 128], strides = [1, 1, 1]} : vector<3x4x128xf32> to vector<1x1x128xf32>
    %16 = vector.shape_cast %15 : vector<1x1x128xf32> to vector<128xf32>
    %17 = vector.shape_cast %16 : vector<128xf32> to vector<1x1x128xf32>
    %18 = vector.broadcast %14 : vector<2x2x1xf32> to vector<2x2x128xf32>
    %19 = vector.broadcast %17 : vector<1x1x128xf32> to vector<2x2x128xf32>
    %20 = arith.mulf %18, %19 : vector<2x2x128xf32>
    %21 = arith.addf %12, %20 : vector<2x2x128xf32>
    %c0_8 = arith.constant 0 : index
    %c0_9 = arith.constant 0 : index
    %22 = vector.load %arg5[%c0_8, %c0_9] : memref<2x8xf32, #tpu.memory_space<vmem>>, vector<2x2xf32>
    %23 = vector.shape_cast %22 : vector<2x2xf32> to vector<2x2x1xf32>
    %24 = vector.extract_strided_slice %0 {offsets = [2, 0, 0], sizes = [1, 1, 128], strides = [1, 1, 1]} : vector<3x4x128xf32> to vector<1x1x128xf32>
    %25 = vector.shape_cast %24 : vector<1x1x128xf32> to vector<128xf32>
    %26 = vector.shape_cast %25 : vector<128xf32> to vector<1x1x128xf32>
    %27 = vector.broadcast %23 : vector<2x2x1xf32> to vector<2x2x128xf32>
    %28 = vector.broadcast %26 : vector<1x1x128xf32> to vector<2x2x128xf32>
    %29 = arith.mulf %27, %28 : vector<2x2x128xf32>
    %30 = arith.addf %21, %29 : vector<2x2x128xf32>
    %c0_10 = arith.constant 0 : index
    %c2 = arith.constant 2 : index
    %31 = vector.load %arg3[%c0_10, %c2] : memref<2x8xf32, #tpu.memory_space<vmem>>, vector<2x2xf32>
    %32 = vector.shape_cast %31 : vector<2x2xf32> to vector<2x2x1xf32>
    %33 = vector.extract_strided_slice %0 {offsets = [0, 1, 0], sizes = [1, 1, 128], strides = [1, 1, 1]} : vector<3x4x128xf32> to vector<1x1x128xf32>
    %34 = vector.shape_cast %33 : vector<1x1x128xf32> to vector<128xf32>
    %35 = vector.shape_cast %34 : vector<128xf32> to vector<1x1x128xf32>
    %36 = vector.broadcast %32 : vector<2x2x1xf32> to vector<2x2x128xf32>
    %37 = vector.broadcast %35 : vector<1x1x128xf32> to vector<2x2x128xf32>
    %38 = arith.mulf %36, %37 : vector<2x2x128xf32>
    %39 = arith.addf %30, %38 : vector<2x2x128xf32>
    %c0_11 = arith.constant 0 : index
    %c2_12 = arith.constant 2 : index
    %40 = vector.load %arg4[%c0_11, %c2_12] : memref<2x8xf32, #tpu.memory_space<vmem>>, vector<2x2xf32>
    %41 = vector.shape_cast %40 : vector<2x2xf32> to vector<2x2x1xf32>
    %42 = vector.extract_strided_slice %0 {offsets = [1, 1, 0], sizes = [1, 1, 128], strides = [1, 1, 1]} : vector<3x4x128xf32> to vector<1x1x128xf32>
    %43 = vector.shape_cast %42 : vector<1x1x128xf32> to vector<128xf32>
    %44 = vector.shape_cast %43 : vector<128xf32> to vector<1x1x128xf32>
    %45 = vector.broadcast %41 : vector<2x2x1xf32> to vector<2x2x128xf32>
    %46 = vector.broadcast %44 : vector<1x1x128xf32> to vector<2x2x128xf32>
    %47 = arith.mulf %45, %46 : vector<2x2x128xf32>
    %48 = arith.addf %39, %47 : vector<2x2x128xf32>
    %c0_13 = arith.constant 0 : index
    %c2_14 = arith.constant 2 : index
    %49 = vector.load %arg5[%c0_13, %c2_14] : memref<2x8xf32, #tpu.memory_space<vmem>>, vector<2x2xf32>
    %50 = vector.shape_cast %49 : vector<2x2xf32> to vector<2x2x1xf32>
    %51 = vector.extract_strided_slice %0 {offsets = [2, 1, 0], sizes = [1, 1, 128], strides = [1, 1, 1]} : vector<3x4x128xf32> to vector<1x1x128xf32>
    %52 = vector.shape_cast %51 : vector<1x1x128xf32> to vector<128xf32>
    %53 = vector.shape_cast %52 : vector<128xf32> to vector<1x1x128xf32>
    %54 = vector.broadcast %50 : vector<2x2x1xf32> to vector<2x2x128xf32>
    %55 = vector.broadcast %53 : vector<1x1x128xf32> to vector<2x2x128xf32>
    %56 = arith.mulf %54, %55 : vector<2x2x128xf32>
    %57 = arith.addf %48, %56 : vector<2x2x128xf32>
    %c0_15 = arith.constant 0 : index
    %c4 = arith.constant 4 : index
    %58 = vector.load %arg3[%c0_15, %c4] : memref<2x8xf32, #tpu.memory_space<vmem>>, vector<2x2xf32>
    %59 = vector.shape_cast %58 : vector<2x2xf32> to vector<2x2x1xf32>
    %60 = vector.extract_strided_slice %0 {offsets = [0, 2, 0], sizes = [1, 1, 128], strides = [1, 1, 1]} : vector<3x4x128xf32> to vector<1x1x128xf32>
    %61 = vector.shape_cast %60 : vector<1x1x128xf32> to vector<128xf32>
    %62 = vector.shape_cast %61 : vector<128xf32> to vector<1x1x128xf32>
    %63 = vector.broadcast %59 : vector<2x2x1xf32> to vector<2x2x128xf32>
    %64 = vector.broadcast %62 : vector<1x1x128xf32> to vector<2x2x128xf32>
    %65 = arith.mulf %63, %64 : vector<2x2x128xf32>
    %66 = arith.addf %57, %65 : vector<2x2x128xf32>
    %c0_16 = arith.constant 0 : index
    %c4_17 = arith.constant 4 : index
    %67 = vector.load %arg4[%c0_16, %c4_17] : memref<2x8xf32, #tpu.memory_space<vmem>>, vector<2x2xf32>
    %68 = vector.shape_cast %67 : vector<2x2xf32> to vector<2x2x1xf32>
    %69 = vector.extract_strided_slice %0 {offsets = [1, 2, 0], sizes = [1, 1, 128], strides = [1, 1, 1]} : vector<3x4x128xf32> to vector<1x1x128xf32>
    %70 = vector.shape_cast %69 : vector<1x1x128xf32> to vector<128xf32>
    %71 = vector.shape_cast %70 : vector<128xf32> to vector<1x1x128xf32>
    %72 = vector.broadcast %68 : vector<2x2x1xf32> to vector<2x2x128xf32>
    %73 = vector.broadcast %71 : vector<1x1x128xf32> to vector<2x2x128xf32>
    %74 = arith.mulf %72, %73 : vector<2x2x128xf32>
    %75 = arith.addf %66, %74 : vector<2x2x128xf32>
    %c0_18 = arith.constant 0 : index
    %c4_19 = arith.constant 4 : index
    %76 = vector.load %arg5[%c0_18, %c4_19] : memref<2x8xf32, #tpu.memory_space<vmem>>, vector<2x2xf32>
    %77 = vector.shape_cast %76 : vector<2x2xf32> to vector<2x2x1xf32>
    %78 = vector.extract_strided_slice %0 {offsets = [2, 2, 0], sizes = [1, 1, 128], strides = [1, 1, 1]} : vector<3x4x128xf32> to vector<1x1x128xf32>
    %79 = vector.shape_cast %78 : vector<1x1x128xf32> to vector<128xf32>
    %80 = vector.shape_cast %79 : vector<128xf32> to vector<1x1x128xf32>
    %81 = vector.broadcast %77 : vector<2x2x1xf32> to vector<2x2x128xf32>
    %82 = vector.broadcast %80 : vector<1x1x128xf32> to vector<2x2x128xf32>
    %83 = arith.mulf %81, %82 : vector<2x2x128xf32>
    %84 = arith.addf %75, %83 : vector<2x2x128xf32>
    %c0_20 = arith.constant 0 : index
    %c6 = arith.constant 6 : index
    %85 = vector.load %arg3[%c0_20, %c6] : memref<2x8xf32, #tpu.memory_space<vmem>>, vector<2x2xf32>
    %86 = vector.shape_cast %85 : vector<2x2xf32> to vector<2x2x1xf32>
    %87 = vector.extract_strided_slice %0 {offsets = [0, 3, 0], sizes = [1, 1, 128], strides = [1, 1, 1]} : vector<3x4x128xf32> to vector<1x1x128xf32>
    %88 = vector.shape_cast %87 : vector<1x1x128xf32> to vector<128xf32>
    %89 = vector.shape_cast %88 : vector<128xf32> to vector<1x1x128xf32>
    %90 = vector.broadcast %86 : vector<2x2x1xf32> to vector<2x2x128xf32>
    %91 = vector.broadcast %89 : vector<1x1x128xf32> to vector<2x2x128xf32>
    %92 = arith.mulf %90, %91 : vector<2x2x128xf32>
    %93 = arith.addf %84, %92 : vector<2x2x128xf32>
    %c0_21 = arith.constant 0 : index
    %c6_22 = arith.constant 6 : index
    %94 = vector.load %arg4[%c0_21, %c6_22] : memref<2x8xf32, #tpu.memory_space<vmem>>, vector<2x2xf32>
    %95 = vector.shape_cast %94 : vector<2x2xf32> to vector<2x2x1xf32>
    %96 = vector.extract_strided_slice %0 {offsets = [1, 3, 0], sizes = [1, 1, 128], strides = [1, 1, 1]} : vector<3x4x128xf32> to vector<1x1x128xf32>
    %97 = vector.shape_cast %96 : vector<1x1x128xf32> to vector<128xf32>
    %98 = vector.shape_cast %97 : vector<128xf32> to vector<1x1x128xf32>
    %99 = vector.broadcast %95 : vector<2x2x1xf32> to vector<2x2x128xf32>
    %100 = vector.broadcast %98 : vector<1x1x128xf32> to vector<2x2x128xf32>
    %101 = arith.mulf %99, %100 : vector<2x2x128xf32>
    %102 = arith.addf %93, %101 : vector<2x2x128xf32>
    %c0_23 = arith.constant 0 : index
    %c6_24 = arith.constant 6 : index
    %103 = vector.load %arg5[%c0_23, %c6_24] : memref<2x8xf32, #tpu.memory_space<vmem>>, vector<2x2xf32>
    %104 = vector.shape_cast %103 : vector<2x2xf32> to vector<2x2x1xf32>
    %105 = vector.extract_strided_slice %0 {offsets = [2, 3, 0], sizes = [1, 1, 128], strides = [1, 1, 1]} : vector<3x4x128xf32> to vector<1x1x128xf32>
    %106 = vector.shape_cast %105 : vector<1x1x128xf32> to vector<128xf32>
    %107 = vector.shape_cast %106 : vector<128xf32> to vector<1x1x128xf32>
    %108 = vector.broadcast %104 : vector<2x2x1xf32> to vector<2x2x128xf32>
    %109 = vector.broadcast %107 : vector<1x1x128xf32> to vector<2x2x128xf32>
    %110 = arith.mulf %108, %109 : vector<2x2x128xf32>
    %111 = arith.addf %102, %110 : vector<2x2x128xf32>
    %112 = math.tanh %111 : vector<2x2x128xf32>
    %113 = vector.shape_cast %112 : vector<2x2x128xf32> to vector<4x128xf32>
    %c0_25 = arith.constant 0 : index
    %c0_26 = arith.constant 0 : index
    %c0_27 = arith.constant 0 : index
    %114 = vector.load %arg7[%c0_25, %c0_26, %c0_27] : memref<2x128x128xf32, #tpu.memory_space<vmem>>, vector<1x128x128xf32>
    %115 = vector.shape_cast %114 : vector<1x128x128xf32> to vector<128x128xf32>
    %cst = arith.constant dense<0.000000e+00> : vector<4x128xf32>
    %116 = tpu.matmul %113, %115, %cst {dimension_numbers = #tpu.dot_dimension_numbers<[1], [0], [0], [1], [0, 0, 1, 1], [], []>} : vector<4x128xf32>, vector<128x128xf32>, vector<4x128xf32> -> vector<4x128xf32>
    %c1 = arith.constant 1 : index
    %c0_28 = arith.constant 0 : index
    %117 = vector.load %arg12[%c1, %c0_28] : memref<5x128xf32, #tpu.memory_space<vmem>>, vector<1x128xf32>
    %118 = vector.broadcast %117 : vector<1x128xf32> to vector<4x128xf32>
    %119 = arith.addf %116, %118 : vector<4x128xf32>
    %120 = math.tanh %119 : vector<4x128xf32>
    %c1_29 = arith.constant 1 : index
    %c0_30 = arith.constant 0 : index
    %c0_31 = arith.constant 0 : index
    %121 = vector.load %arg7[%c1_29, %c0_30, %c0_31] : memref<2x128x128xf32, #tpu.memory_space<vmem>>, vector<1x128x128xf32>
    %122 = vector.shape_cast %121 : vector<1x128x128xf32> to vector<128x128xf32>
    %cst_32 = arith.constant dense<0.000000e+00> : vector<4x128xf32>
    %123 = tpu.matmul %120, %122, %cst_32 {dimension_numbers = #tpu.dot_dimension_numbers<[1], [0], [0], [1], [0, 0, 1, 1], [], []>} : vector<4x128xf32>, vector<128x128xf32>, vector<4x128xf32> -> vector<4x128xf32>
    %c2_33 = arith.constant 2 : index
    %c0_34 = arith.constant 0 : index
    %124 = vector.load %arg12[%c2_33, %c0_34] : memref<5x128xf32, #tpu.memory_space<vmem>>, vector<1x128xf32>
    %125 = vector.broadcast %124 : vector<1x128xf32> to vector<4x128xf32>
    %126 = arith.addf %123, %125 : vector<4x128xf32>
    %127 = vector.shape_cast %126 : vector<4x128xf32> to vector<2x2x128xf32>
    %cst_35 = arith.constant dense<0xFF800000> : vector<2x128xf32>
    %128 = vector.multi_reduction <maximumf>, %127, %cst_35 [1] : vector<2x2x128xf32> to vector<2x128xf32>
    %129 = vector.extract_strided_slice %128 {offsets = [0, 0], sizes = [2, 64], strides = [1, 1]} : vector<2x128xf32> to vector<2x64xf32>
    %130 = vector.extract_strided_slice %128 {offsets = [0, 64], sizes = [2, 64], strides = [1, 1]} : vector<2x128xf32> to vector<2x64xf32>
    %131 = arith.maximumf %129, %130 : vector<2x64xf32>
    %132 = vector.extract_strided_slice %131 {offsets = [0, 0], sizes = [2, 32], strides = [1, 1]} : vector<2x64xf32> to vector<2x32xf32>
    %133 = vector.extract_strided_slice %131 {offsets = [0, 32], sizes = [2, 32], strides = [1, 1]} : vector<2x64xf32> to vector<2x32xf32>
    %134 = arith.maximumf %132, %133 : vector<2x32xf32>
    %c0_36 = arith.constant 0 : index
    %c0_37 = arith.constant 0 : index
    %135 = vector.load %arg10[%c0_36, %c0_37] : memref<32x128xf32, #tpu.memory_space<vmem>>, vector<32x128xf32>
    %cst_38 = arith.constant dense<0.000000e+00> : vector<2x128xf32>
    %136 = tpu.matmul %134, %135, %cst_38 {dimension_numbers = #tpu.dot_dimension_numbers<[1], [0], [0], [1], [0, 0, 1, 1], [], []>} : vector<2x32xf32>, vector<32x128xf32>, vector<2x128xf32> -> vector<2x128xf32>
    %c0_39 = arith.constant 0 : index
    %c0_40 = arith.constant 0 : index
    %137 = vector.load %arg11[%c0_39, %c0_40] : memref<32x4xf32, #tpu.memory_space<vmem>>, vector<32x4xf32>
    %cst_41 = arith.constant dense<0.000000e+00> : vector<2x4xf32>
    %138 = tpu.matmul %134, %137, %cst_41 {dimension_numbers = #tpu.dot_dimension_numbers<[1], [0], [0], [1], [0, 0, 1, 1], [], []>} : vector<2x32xf32>, vector<32x4xf32>, vector<2x4xf32> -> vector<2x4xf32>
    %139 = tpu.concatenate %134, %134, %134, %134 in 1 : vector<2x32xf32>, vector<2x32xf32>, vector<2x32xf32>, vector<2x32xf32> -> vector<2x128xf32>
    %c0_42 = arith.constant 0 : index
    %c0_43 = arith.constant 0 : index
    %c0_44 = arith.constant 0 : index
    %140 = vector.load %arg8[%c0_42, %c0_43, %c0_44] : memref<2x2x128xf32, #tpu.memory_space<vmem>>, vector<2x2x128xf32>
    %c3 = arith.constant 3 : index
    %c0_45 = arith.constant 0 : index
    %141 = vector.load %arg12[%c3, %c0_45] : memref<5x128xf32, #tpu.memory_space<vmem>>, vector<1x128xf32>
    %c0_46 = arith.constant 0 : index
    %c0_47 = arith.constant 0 : index
    %142 = vector.load %arg1[%c0_46, %c0_47] : memref<2x16xf32, #tpu.memory_space<vmem>>, vector<2x8xf32>
    %143 = vector.shape_cast %142 : vector<2x8xf32> to vector<2x8x1xf32>
    %144 = vector.extract_strided_slice %140 {offsets = [0, 0, 0], sizes = [1, 1, 128], strides = [1, 1, 1]} : vector<2x2x128xf32> to vector<1x1x128xf32>
    %145 = vector.shape_cast %144 : vector<1x1x128xf32> to vector<128xf32>
    %146 = vector.shape_cast %145 : vector<128xf32> to vector<1x1x128xf32>
    %147 = vector.broadcast %143 : vector<2x8x1xf32> to vector<2x8x128xf32>
    %148 = vector.broadcast %146 : vector<1x1x128xf32> to vector<2x8x128xf32>
    %149 = arith.mulf %147, %148 : vector<2x8x128xf32>
    %150 = vector.shape_cast %141 : vector<1x128xf32> to vector<1x1x128xf32>
    %151 = vector.broadcast %150 : vector<1x1x128xf32> to vector<2x8x128xf32>
    %152 = arith.addf %151, %149 : vector<2x8x128xf32>
    %c0_48 = arith.constant 0 : index
    %c0_49 = arith.constant 0 : index
    %153 = vector.load %arg2[%c0_48, %c0_49] : memref<2x16xf32, #tpu.memory_space<vmem>>, vector<2x8xf32>
    %154 = vector.shape_cast %153 : vector<2x8xf32> to vector<2x8x1xf32>
    %155 = vector.extract_strided_slice %140 {offsets = [1, 0, 0], sizes = [1, 1, 128], strides = [1, 1, 1]} : vector<2x2x128xf32> to vector<1x1x128xf32>
    %156 = vector.shape_cast %155 : vector<1x1x128xf32> to vector<128xf32>
    %157 = vector.shape_cast %156 : vector<128xf32> to vector<1x1x128xf32>
    %158 = vector.broadcast %154 : vector<2x8x1xf32> to vector<2x8x128xf32>
    %159 = vector.broadcast %157 : vector<1x1x128xf32> to vector<2x8x128xf32>
    %160 = arith.mulf %158, %159 : vector<2x8x128xf32>
    %161 = arith.addf %152, %160 : vector<2x8x128xf32>
    %c0_50 = arith.constant 0 : index
    %c8 = arith.constant 8 : index
    %162 = vector.load %arg1[%c0_50, %c8] : memref<2x16xf32, #tpu.memory_space<vmem>>, vector<2x8xf32>
    %163 = vector.shape_cast %162 : vector<2x8xf32> to vector<2x8x1xf32>
    %164 = vector.extract_strided_slice %140 {offsets = [0, 1, 0], sizes = [1, 1, 128], strides = [1, 1, 1]} : vector<2x2x128xf32> to vector<1x1x128xf32>
    %165 = vector.shape_cast %164 : vector<1x1x128xf32> to vector<128xf32>
    %166 = vector.shape_cast %165 : vector<128xf32> to vector<1x1x128xf32>
    %167 = vector.broadcast %163 : vector<2x8x1xf32> to vector<2x8x128xf32>
    %168 = vector.broadcast %166 : vector<1x1x128xf32> to vector<2x8x128xf32>
    %169 = arith.mulf %167, %168 : vector<2x8x128xf32>
    %170 = arith.addf %161, %169 : vector<2x8x128xf32>
    %c0_51 = arith.constant 0 : index
    %c8_52 = arith.constant 8 : index
    %171 = vector.load %arg2[%c0_51, %c8_52] : memref<2x16xf32, #tpu.memory_space<vmem>>, vector<2x8xf32>
    %172 = vector.shape_cast %171 : vector<2x8xf32> to vector<2x8x1xf32>
    %173 = vector.extract_strided_slice %140 {offsets = [1, 1, 0], sizes = [1, 1, 128], strides = [1, 1, 1]} : vector<2x2x128xf32> to vector<1x1x128xf32>
    %174 = vector.shape_cast %173 : vector<1x1x128xf32> to vector<128xf32>
    %175 = vector.shape_cast %174 : vector<128xf32> to vector<1x1x128xf32>
    %176 = vector.broadcast %172 : vector<2x8x1xf32> to vector<2x8x128xf32>
    %177 = vector.broadcast %175 : vector<1x1x128xf32> to vector<2x8x128xf32>
    %178 = arith.mulf %176, %177 : vector<2x8x128xf32>
    %179 = arith.addf %170, %178 : vector<2x8x128xf32>
    %180 = vector.shape_cast %139 : vector<2x128xf32> to vector<2x1x128xf32>
    %181 = math.tanh %179 : vector<2x8x128xf32>
    %182 = vector.broadcast %180 : vector<2x1x128xf32> to vector<2x8x128xf32>
    %183 = arith.mulf %181, %182 : vector<2x8x128xf32>
    %184 = vector.shape_cast %183 : vector<2x8x128xf32> to vector<16x128xf32>
    %c0_53 = arith.constant 0 : index
    %c0_54 = arith.constant 0 : index
    %185 = vector.load %arg9[%c0_53, %c0_54] : memref<128x128xf32, #tpu.memory_space<vmem>>, vector<128x128xf32>
    %cst_55 = arith.constant dense<0.000000e+00> : vector<16x128xf32>
    %186 = tpu.matmul %184, %185, %cst_55 {dimension_numbers = #tpu.dot_dimension_numbers<[1], [0], [0], [1], [0, 0, 1, 1], [], []>} : vector<16x128xf32>, vector<128x128xf32>, vector<16x128xf32> -> vector<16x128xf32>
    %c4_56 = arith.constant 4 : index
    %c0_57 = arith.constant 0 : index
    %187 = vector.load %arg12[%c4_56, %c0_57] : memref<5x128xf32, #tpu.memory_space<vmem>>, vector<1x128xf32>
    %188 = vector.broadcast %187 : vector<1x128xf32> to vector<16x128xf32>
    %189 = arith.addf %186, %188 : vector<16x128xf32>
    %190 = math.tanh %189 : vector<16x128xf32>
    %191 = vector.shape_cast %190 : vector<16x128xf32> to vector<2x8x128xf32>
    %192 = vector.broadcast %180 : vector<2x1x128xf32> to vector<2x8x128xf32>
    %193 = arith.mulf %191, %192 : vector<2x8x128xf32>
    %194 = vector.shape_cast %136 : vector<2x128xf32> to vector<2x1x128xf32>
    %c0_58 = arith.constant 0 : index
    %c0_59 = arith.constant 0 : index
    %195 = vector.load %arg13[%c0_58, %c0_59] : memref<4x128xf32, #tpu.memory_space<vmem>>, vector<4x128xf32>
    %196 = vector.shape_cast %195 : vector<4x128xf32> to vector<1x4x128xf32>
    %197 = vector.broadcast %194 : vector<2x1x128xf32> to vector<2x4x128xf32>
    %198 = vector.broadcast %196 : vector<1x4x128xf32> to vector<2x4x128xf32>
    %199 = arith.mulf %197, %198 : vector<2x4x128xf32>
    "tpu.trace_start"() <{level = 10 : i32, message = "bol,bpl->bop"}> : () -> ()
    %cst_60 = arith.constant dense<0.000000e+00> : vector<2x4x8xf32>
    %200 = tpu.matmul %199, %193, %cst_60 {dimension_numbers = #tpu.dot_dimension_numbers<[2], [2], [1], [1], [0, 0, 0, 1, 1, 1], [0], [0]>} : vector<2x4x128xf32>, vector<2x8x128xf32>, vector<2x4x8xf32> -> vector<2x4x8xf32>
    "tpu.trace_stop"() : () -> ()
    %201 = vector.shape_cast %138 : vector<2x4xf32> to vector<2x4x1xf32>
    %202 = vector.broadcast %201 : vector<2x4x1xf32> to vector<2x4x8xf32>
    %203 = arith.addf %200, %202 : vector<2x4x8xf32>
    %c0_61 = arith.constant 0 : index
    %c0_62 = arith.constant 0 : index
    %c0_63 = arith.constant 0 : index
    %204 = vector.load %arg14[%c0_61, %c0_62, %c0_63] : memref<2x4x8xf32, #tpu.memory_space<vmem>>, vector<2x4x8xf32>
    tpu.vector_store %arg14[%c0_61, %c0_62, %c0_63], %203 {strides = array<i32>} : memref<2x4x8xf32, #tpu.memory_space<vmem>>, vector<2x4x8xf32>,
    return
  }
  func.func @transform_0(%arg0: i32) -> (i32, i32) {
    %c0_i32 = arith.constant 0 : i32
    %c0_i32_0 = arith.constant 0 : i32
    return %arg0, %c0_i32 : i32, i32
  }
  func.func @transform_1(%arg0: i32) -> (i32, i32) {
    %c0_i32 = arith.constant 0 : i32
    %c0_i32_0 = arith.constant 0 : i32
    return %arg0, %c0_i32 : i32, i32
  }
  func.func @transform_2(%arg0: i32) -> (i32, i32) {
    %c0_i32 = arith.constant 0 : i32
    %c0_i32_0 = arith.constant 0 : i32
    return %arg0, %c0_i32 : i32, i32
  }
  func.func @transform_3(%arg0: i32) -> (i32, i32) {
    %c0_i32 = arith.constant 0 : i32
    %c0_i32_0 = arith.constant 0 : i32
    return %arg0, %c0_i32 : i32, i32
  }
  func.func @transform_4(%arg0: i32) -> (i32, i32) {
    %c0_i32 = arith.constant 0 : i32
    %c0_i32_0 = arith.constant 0 : i32
    return %arg0, %c0_i32 : i32, i32
  }
  func.func @transform_5(%arg0: i32) -> (i32, i32, i32) {
    %c0_i32 = arith.constant 0 : i32
    %c0_i32_0 = arith.constant 0 : i32
    %c0_i32_1 = arith.constant 0 : i32
    %c0_i32_2 = arith.constant 0 : i32
    return %c0_i32, %c0_i32_0, %c0_i32_1 : i32, i32, i32
  }
  func.func @transform_6(%arg0: i32) -> (i32, i32, i32) {
    %c0_i32 = arith.constant 0 : i32
    %c0_i32_0 = arith.constant 0 : i32
    %c0_i32_1 = arith.constant 0 : i32
    %c0_i32_2 = arith.constant 0 : i32
    return %c0_i32, %c0_i32_0, %c0_i32_1 : i32, i32, i32
  }
  func.func @transform_7(%arg0: i32) -> (i32, i32, i32) {
    %c0_i32 = arith.constant 0 : i32
    %c0_i32_0 = arith.constant 0 : i32
    %c0_i32_1 = arith.constant 0 : i32
    %c0_i32_2 = arith.constant 0 : i32
    return %c0_i32, %c0_i32_0, %c0_i32_1 : i32, i32, i32
  }
  func.func @transform_8(%arg0: i32) -> (i32, i32) {
    %c0_i32 = arith.constant 0 : i32
    %c0_i32_0 = arith.constant 0 : i32
    %c0_i32_1 = arith.constant 0 : i32
    return %c0_i32, %c0_i32_0 : i32, i32
  }
  func.func @transform_9(%arg0: i32) -> (i32, i32) {
    %c0_i32 = arith.constant 0 : i32
    %c0_i32_0 = arith.constant 0 : i32
    %c0_i32_1 = arith.constant 0 : i32
    return %c0_i32, %c0_i32_0 : i32, i32
  }
  func.func @transform_10(%arg0: i32) -> (i32, i32) {
    %c0_i32 = arith.constant 0 : i32
    %c0_i32_0 = arith.constant 0 : i32
    %c0_i32_1 = arith.constant 0 : i32
    return %c0_i32, %c0_i32_0 : i32, i32
  }
  func.func @transform_11(%arg0: i32) -> (i32, i32) {
    %c0_i32 = arith.constant 0 : i32
    %c0_i32_0 = arith.constant 0 : i32
    %c0_i32_1 = arith.constant 0 : i32
    return %c0_i32, %c0_i32_0 : i32, i32
  }
  func.func @transform_12(%arg0: i32) -> (i32, i32) {
    %c0_i32 = arith.constant 0 : i32
    %c0_i32_0 = arith.constant 0 : i32
    %c0_i32_1 = arith.constant 0 : i32
    return %c0_i32, %c0_i32_0 : i32, i32
  }
  func.func @transform_13(%arg0: i32) -> (i32, i32, i32) {
    %c0_i32 = arith.constant 0 : i32
    %c0_i32_0 = arith.constant 0 : i32
    %c0_i32_1 = arith.constant 0 : i32
    return %arg0, %c0_i32, %c0_i32_0 : i32, i32, i32
  }
}

</mosaic_0001>

<llo_original>
// kernel: tpu_custom_call.1
$region0: #{tpu_custom_call.1}
  #allocation0 [shape = 'u32[]', space=smem, size = 0x4, offset = 0x4, fixed_abs, tag = 'smem constant byte address 0x4 - core index']
  #allocation1 [shape = 'u32[144,128]{1,0:T(1,128)}', space=vmem, size = 0x12000, scoped, tag = 'internal scratch']
  %s0 = inlined_call_operand.vmem [shape: f32[2,16], index: 0, kind: input, shape index: {}]
  %s1 = inlined_call_operand.hbm [shape: f32[2,16], index: 1, kind: input, shape index: {}]
  %s2 = inlined_call_operand.hbm [shape: f32[2,8], index: 2, kind: input, shape index: {}]
  %s3 = inlined_call_operand.hbm [shape: f32[2,8], index: 3, kind: input, shape index: {}]
  %s4 = inlined_call_operand.hbm [shape: f32[2,8], index: 4, kind: input, shape index: {}]
  %s5 = inlined_call_operand.vmem [shape: f32[3,4,128], index: 5, kind: input, shape index: {}]
  %s6 = inlined_call_operand.hbm [shape: f32[2,128,128], index: 6, kind: input, shape index: {}]
  %s7 = inlined_call_operand.vmem [shape: f32[2,2,128], index: 7, kind: input, shape index: {}]
  %s8 = inlined_call_operand.hbm [shape: f32[128,128], index: 8, kind: input, shape index: {}]
  %s9 = inlined_call_operand.vmem [shape: f32[32,128], index: 9, kind: input, shape index: {}]
  %s10 = inlined_call_operand.vmem [shape: f32[32,4], index: 10, kind: input, shape index: {}]
  %s11 = inlined_call_operand.vmem [shape: f32[5,128], index: 11, kind: input, shape index: {}]
  %s12 = inlined_call_operand.vmem [shape: f32[4,128], index: 12, kind: input, shape index: {}]
  %s13 = inlined_call_operand.hbm [shape: f32[2,4,8], index: 13, kind: output, shape index: {}]
  %s14 = sld [smem:[#allocation0]]
  $region86: #{tpu_custom_call.1} parent=0
    _
  %s16 = ssub.s32 1, %s14
  %s17 = scalar_select 0, %s16, %s14
  $region1: #{tpu_custom_call.1} parent=0
    #allocation2 [shape = 'u8[1024]{0}', space=vmem, size = 0x400, scoped, tag = 'input window, operand 1, single buffered']
    #allocation3 [shape = 's32[1]{0}', space=sflag, size = 0x4, scoped, tag = 'scoped memory for tpu_custom_call.1']
    #allocation4 [shape = 's32[1]{0}', space=sflag, size = 0x4, scoped, tag = 'scoped memory for tpu_custom_call.1']
    #allocation5 [shape = 'u8[1024]{0}', space=vmem, size = 0x400, scoped, tag = 'input window, operand 2, single buffered']
    #allocation6 [shape = 's32[1]{0}', space=sflag, size = 0x4, scoped, tag = 'scoped memory for tpu_custom_call.1']
    #allocation7 [shape = 'u8[1024]{0}', space=vmem, size = 0x400, scoped, tag = 'input window, operand 3, single buffered']
    #allocation8 [shape = 'u8[1024]{0}', space=vmem, size = 0x400, scoped, tag = 'input window, operand 4, single buffered']
    #allocation9 [shape = 's32[1]{0}', space=sflag, size = 0x4, scoped, tag = 'scoped memory for tpu_custom_call.1']
    #allocation10 [shape = 'u8[131072]{0}', space=vmem, size = 0x20000, scoped, tag = 'input window, operand 6, single buffered']
    #allocation11 [shape = 'u8[65536]{0}', space=vmem, size = 0x10000, scoped, tag = 'input window, operand 8, single buffered']
    #allocation12 [shape = 's32[1]{0}', space=sflag, size = 0x4, scoped, tag = 'scoped memory for tpu_custom_call.1']
    #allocation13 [shape = 'u8[4096]{0}', space=vmem, size = 0x1000, scoped, tag = 'output window, operand 0, single buffered']
    %18 = vsyncpa [#allocation3], 0
    %19 = vsyncpa [#allocation6], 0
    %20 = vsyncpa [#allocation9], 0
    %21 = vsyncpa [#allocation12], 0
    %22 = vsyncpa [#allocation4], 0
    // Predicated region
    $region2: #{tpu_custom_call.1} parent=1 // pred_check
      _
    $region3: #{tpu_custom_call.1} parent=1 // pred_check_branch
      %24 = sbr.rel (0) target = $region5
    $region4: #{tpu_custom_call.1} parent=1 // pred_region
      _
    $region5: #{tpu_custom_call.1} parent=1 // pred_fallthru
      _
    // Predicated region
    $region6: #{tpu_custom_call.1} parent=1 // pred_check
      _
    $region7: #{tpu_custom_call.1} parent=1 // pred_check_branch
      %26 = sbr.rel (0) target = $region9
    $region8: #{tpu_custom_call.1} parent=1 // pred_region
      %s28 = ssub.s32 32, 32
      %29 = vsyncadd [#allocation3], %s28
      %s31 = sshll.u32 [#allocation2], 4
      %s32 = int_to_ptr.vmem [resolvable:$true] %s31
      %34 = dma.hbm_to_vmem [thread:$0]  %s1, 32, %s32, [#allocation3]
    $region9: #{tpu_custom_call.1} parent=1 // pred_fallthru
      _
    // Predicated region
    $region10: #{tpu_custom_call.1} parent=1 // pred_check
      _
    $region11: #{tpu_custom_call.1} parent=1 // pred_check_branch
      %36 = sbr.rel (0) target = $region13
    $region12: #{tpu_custom_call.1} parent=1 // pred_region
      %s38 = ssub.s32 32, 32
      %39 = vsyncadd [#allocation6], %s38
      %s41 = sshll.u32 [#allocation5], 4
      %s42 = int_to_ptr.vmem [resolvable:$true] %s41
      %44 = dma.hbm_to_vmem [thread:$0]  %s2, 32, %s42, [#allocation6]
    $region13: #{tpu_custom_call.1} parent=1 // pred_fallthru
      _
    // Predicated region
    $region14: #{tpu_custom_call.1} parent=1 // pred_check
      _
    $region15: #{tpu_custom_call.1} parent=1 // pred_check_branch
      %46 = sbr.rel (0) target = $region17
    $region16: #{tpu_custom_call.1} parent=1 // pred_region
      %s48 = ssub.s32 32, 32
      %49 = vsyncadd [#allocation6], %s48
      %s51 = sshll.u32 [#allocation7], 4
      %s52 = int_to_ptr.vmem [resolvable:$true] %s51
      %54 = dma.hbm_to_vmem [thread:$0]  %s3, 32, %s52, [#allocation6]
    $region17: #{tpu_custom_call.1} parent=1 // pred_fallthru
      _
    // Predicated region
    $region18: #{tpu_custom_call.1} parent=1 // pred_check
      _
    $region19: #{tpu_custom_call.1} parent=1 // pred_check_branch
      %56 = sbr.rel (0) target = $region21
    $region20: #{tpu_custom_call.1} parent=1 // pred_region
      %s58 = ssub.s32 32, 32
      %59 = vsyncadd [#allocation9], %s58
      %s61 = sshll.u32 [#allocation8], 4
      %s62 = int_to_ptr.vmem [resolvable:$true] %s61
      %64 = dma.hbm_to_vmem [thread:$0]  %s4, 32, %s62, [#allocation9]
    $region21: #{tpu_custom_call.1} parent=1 // pred_fallthru
      _
    // Predicated region
    $region22: #{tpu_custom_call.1} parent=1 // pred_check
      _
    $region23: #{tpu_custom_call.1} parent=1 // pred_check_branch
      %66 = sbr.rel (0) target = $region25
    $region24: #{tpu_custom_call.1} parent=1 // pred_region
      _
    $region25: #{tpu_custom_call.1} parent=1 // pred_fallthru
      _
    // Predicated region
    $region26: #{tpu_custom_call.1} parent=1 // pred_check
      _
    $region27: #{tpu_custom_call.1} parent=1 // pred_check_branch
      %68 = sbr.rel (0) target = $region29
    $region28: #{tpu_custom_call.1} parent=1 // pred_region
      %s70 = ssub.s32 4096, 4096
      %71 = vsyncadd [#allocation9], %s70
      %s72 = sshll.u32 [#allocation10], 4
      %s73 = int_to_ptr.vmem [resolvable:$true] %s72
      %78 = dma.hbm_to_vmem [thread:$0]  %s6, 4096, %s73, [#allocation9], 128, 128, 8
    $region29: #{tpu_custom_call.1} parent=1 // pred_fallthru
      _
    // Predicated region
    $region30: #{tpu_custom_call.1} parent=1 // pred_check
      _
    $region31: #{tpu_custom_call.1} parent=1 // pred_check_branch
      %80 = sbr.rel (0) target = $region33
    $region32: #{tpu_custom_call.1} parent=1 // pred_region
      _
    $region33: #{tpu_custom_call.1} parent=1 // pred_fallthru
      _
    // Predicated region
    $region34: #{tpu_custom_call.1} parent=1 // pred_check
      _
    $region35: #{tpu_custom_call.1} parent=1 // pred_check_branch
      %82 = sbr.rel (0) target = $region37
    $region36: #{tpu_custom_call.1} parent=1 // pred_region
      %s84 = ssub.s32 2048, 2048
      %85 = vsyncadd [#allocation12], %s84
      %s86 = sshll.u32 [#allocation11], 4
      %s87 = int_to_ptr.vmem [resolvable:$true] %s86
      %92 = dma.hbm_to_vmem [thread:$0]  %s8, 2048, %s87, [#allocation12], 128, 128, 8
    $region37: #{tpu_custom_call.1} parent=1 // pred_fallthru
      _
    // Predicated region
    $region38: #{tpu_custom_call.1} parent=1 // pred_check
      _
    $region39: #{tpu_custom_call.1} parent=1 // pred_check_branch
      %94 = sbr.rel (0) target = $region41
    $region40: #{tpu_custom_call.1} parent=1 // pred_region
      _
    $region41: #{tpu_custom_call.1} parent=1 // pred_fallthru
      _
    // Predicated region
    $region42: #{tpu_custom_call.1} parent=1 // pred_check
      _
    $region43: #{tpu_custom_call.1} parent=1 // pred_check_branch
      %96 = sbr.rel (0) target = $region45
    $region44: #{tpu_custom_call.1} parent=1 // pred_region
      _
    $region45: #{tpu_custom_call.1} parent=1 // pred_fallthru
      _
    // Predicated region
    $region46: #{tpu_custom_call.1} parent=1 // pred_check
      _
    $region47: #{tpu_custom_call.1} parent=1 // pred_check_branch
      %98 = sbr.rel (0) target = $region49
    $region48: #{tpu_custom_call.1} parent=1 // pred_region
      _
    $region49: #{tpu_custom_call.1} parent=1 // pred_fallthru
      _
    // Predicated region
    $region50: #{tpu_custom_call.1} parent=1 // pred_check
      _
    $region51: #{tpu_custom_call.1} parent=1 // pred_check_branch
      %100 = sbr.rel (0) target = $region53
    $region52: #{tpu_custom_call.1} parent=1 // pred_region
      _
    $region53: #{tpu_custom_call.1} parent=1 // pred_fallthru
      _
    // Predicated region
    $region54: #{tpu_custom_call.1} parent=1 // pred_check
      _
    $region55: #{tpu_custom_call.1} parent=1 // pred_check_branch
      %102 = sbr.rel (0) target = $region57
    $region56: #{tpu_custom_call.1} parent=1 // pred_region
      %103 = dma.done [#allocation3], 32
    $region57: #{tpu_custom_call.1} parent=1 // pred_fallthru
      _
    // Predicated region
    $region58: #{tpu_custom_call.1} parent=1 // pred_check
      _
    $region59: #{tpu_custom_call.1} parent=1 // pred_check_branch
      %105 = sbr.rel (0) target = $region61
    $region60: #{tpu_custom_call.1} parent=1 // pred_region
      %106 = dma.done [#allocation6], 32
    $region61: #{tpu_custom_call.1} parent=1 // pred_fallthru
      _
    // Predicated region
    $region62: #{tpu_custom_call.1} parent=1 // pred_check
      _
    $region63: #{tpu_custom_call.1} parent=1 // pred_check_branch
      %108 = sbr.rel (0) target = $region65
    $region64: #{tpu_custom_call.1} parent=1 // pred_region
      %109 = dma.done [#allocation6], 32
    $region65: #{tpu_custom_call.1} parent=1 // pred_fallthru
      _
    // Predicated region
    $region66: #{tpu_custom_call.1} parent=1 // pred_check
      _
    $region67: #{tpu_custom_call.1} parent=1 // pred_check_branch
      %111 = sbr.rel (0) target = $region69
    $region68: #{tpu_custom_call.1} parent=1 // pred_region
      %112 = dma.done [#allocation9], 32
    $region69: #{tpu_custom_call.1} parent=1 // pred_fallthru
      _
    // Predicated region
    $region70: #{tpu_custom_call.1} parent=1 // pred_check
      _
    $region71: #{tpu_custom_call.1} parent=1 // pred_check_branch
      %114 = sbr.rel (0) target = $region73
    $region72: #{tpu_custom_call.1} parent=1 // pred_region
      %115 = dma.done [#allocation9], 4096
    $region73: #{tpu_custom_call.1} parent=1 // pred_fallthru
      _
    // Predicated region
    $region74: #{tpu_custom_call.1} parent=1 // pred_check
      _
    $region75: #{tpu_custom_call.1} parent=1 // pred_check_branch
      %117 = sbr.rel (0) target = $region77
    $region76: #{tpu_custom_call.1} parent=1 // pred_region
      %118 = dma.done [#allocation12], 2048
    $region77: #{tpu_custom_call.1} parent=1 // pred_fallthru
      _
    %v119 = vld [vmem:[%s5] sm:$0xf]
    %v120 = vld [vmem:[%s5 + $0x4] sm:$0xf]
    %v121 = vld [vmem:[%s5 + $0x8] sm:$0xf]
    %v122 = vld [vmem:[%s11] sm:$0x1]
    %v123 = vld [vmem:[#allocation5] sm:$0x3]
    %v124 = vlaneseq
    %v125 = vshrl.u32 %v124, 7
    %v126 = vsub.s32 0, %v125
    %v127 = vrot.slane %v123, %v126
    %129 = vbcast.lane.b32.xlu0 %v127, 256
    %v130 = vpop.permute.xlu0 %129
    %v131 = vlaneseq
    %v132 = vshrl.u32 %v131, 7
    %v133 = vsub.s32 1, %v132
    %v134 = vrot.slane %v123, %v133
    %136 = vbcast.lane.b32.xlu0 %v134, 256
    %v137 = vpop.permute.xlu0 %136
    %v138 = vlaneseq
    %v139 = vshrl.u32 %v138, 7
    %v140 = vsub.s32 0, %v139
    %v141 = vrot.slane %v119, %v140
    %v142 = vmul.f32 %v130, %v141
    %v143 = vmul.f32 %v137, %v141
    %v144 = vlaneseq
    %v145 = vshrl.u32 %v144, 7
    %v146 = vsub.s32 0, %v145
    %v147 = vrot.slane %v122, %v146
    %v148 = vadd.f32 %v147, %v142
    %v149 = vadd.f32 %v147, %v143
    %v150 = vld [vmem:[#allocation7] sm:$0x3]
    %v151 = vlaneseq
    %v152 = vshrl.u32 %v151, 7
    %v153 = vsub.s32 0, %v152
    %v154 = vrot.slane %v150, %v153
    %156 = vbcast.lane.b32.xlu0 %v154, 256
    %v157 = vpop.permute.xlu0 %156
    %v158 = vlaneseq
    %v159 = vshrl.u32 %v158, 7
    %v160 = vsub.s32 1, %v159
    %v161 = vrot.slane %v150, %v160
    %163 = vbcast.lane.b32.xlu0 %v161, 256
    %v164 = vpop.permute.xlu0 %163
    %v165 = vlaneseq
    %v166 = vshrl.u32 %v165, 7
    %v167 = vsub.s32 0, %v166
    %v168 = vrot.slane %v120, %v167
    %v169 = vmul.f32 %v157, %v168
    %v170 = vmul.f32 %v164, %v168
    %v171 = vadd.f32 %v148, %v169
    %v172 = vadd.f32 %v149, %v170
    %v173 = vld [vmem:[#allocation8] sm:$0x3]
    %v174 = vlaneseq
    %v175 = vshrl.u32 %v174, 7
    %v176 = vsub.s32 0, %v175
    %v177 = vrot.slane %v173, %v176
    %179 = vbcast.lane.b32.xlu0 %v177, 256
    %v180 = vpop.permute.xlu0 %179
    %v181 = vlaneseq
    %v182 = vshrl.u32 %v181, 7
    %v183 = vsub.s32 1, %v182
    %v184 = vrot.slane %v173, %v183
    %186 = vbcast.lane.b32.xlu0 %v184, 256
    %v187 = vpop.permute.xlu0 %186
    %v188 = vlaneseq
    %v189 = vshrl.u32 %v188, 7
    %v190 = vsub.s32 0, %v189
    %v191 = vrot.slane %v121, %v190
    %v192 = vmul.f32 %v180, %v191
    %v193 = vmul.f32 %v187, %v191
    %v194 = vadd.f32 %v171, %v192
    %v195 = vadd.f32 %v172, %v193
    %s197 = sor.u32 256, 2
    %198 = vbcast.lane.b32.xlu0 %v127, %s197
    %v199 = vpop.permute.xlu0 %198
    %s201 = sor.u32 256, 2
    %202 = vbcast.lane.b32.xlu0 %v134, %s201
    %v203 = vpop.permute.xlu0 %202
    %v204 = vlaneseq
    %v205 = vshrl.u32 %v204, 7
    %v206 = vsub.s32 1, %v205
    %v207 = vrot.slane %v119, %v206
    %v208 = vmul.f32 %v199, %v207
    %v209 = vmul.f32 %v203, %v207
    %v210 = vadd.f32 %v194, %v208
    %v211 = vadd.f32 %v195, %v209
    %s213 = sor.u32 256, 2
    %214 = vbcast.lane.b32.xlu0 %v154, %s213
    %v215 = vpop.permute.xlu0 %214
    %s217 = sor.u32 256, 2
    %218 = vbcast.lane.b32.xlu0 %v161, %s217
    %v219 = vpop.permute.xlu0 %218
    %v220 = vlaneseq
    %v221 = vshrl.u32 %v220, 7
    %v222 = vsub.s32 1, %v221
    %v223 = vrot.slane %v120, %v222
    %v224 = vmul.f32 %v215, %v223
    %v225 = vmul.f32 %v219, %v223
    %v226 = vadd.f32 %v210, %v224
    %v227 = vadd.f32 %v211, %v225
    %s229 = sor.u32 256, 2
    %230 = vbcast.lane.b32.xlu0 %v177, %s229
    %v231 = vpop.permute.xlu0 %230
    %s233 = sor.u32 256, 2
    %234 = vbcast.lane.b32.xlu0 %v184, %s233
    %v235 = vpop.permute.xlu0 %234
    %v236 = vlaneseq
    %v237 = vshrl.u32 %v236, 7
    %v238 = vsub.s32 1, %v237
    %v239 = vrot.slane %v121, %v238
    %v240 = vmul.f32 %v231, %v239
    %v241 = vmul.f32 %v235, %v239
    %v242 = vadd.f32 %v226, %v240
    %v243 = vadd.f32 %v227, %v241
    %s245 = sor.u32 256, 4
    %246 = vbcast.lane.b32.xlu0 %v127, %s245
    %v247 = vpop.permute.xlu0 %246
    %s249 = sor.u32 256, 4
    %250 = vbcast.lane.b32.xlu0 %v134, %s249
    %v251 = vpop.permute.xlu0 %250
    %v252 = vlaneseq
    %v253 = vshrl.u32 %v252, 7
    %v254 = vsub.s32 2, %v253
    %v255 = vrot.slane %v119, %v254
    %v256 = vmul.f32 %v247, %v255
    %v257 = vmul.f32 %v251, %v255
    %v258 = vadd.f32 %v242, %v256
    %v259 = vadd.f32 %v243, %v257
    %s261 = sor.u32 256, 4
    %262 = vbcast.lane.b32.xlu0 %v154, %s261
    %v263 = vpop.permute.xlu0 %262
    %s265 = sor.u32 256, 4
    %266 = vbcast.lane.b32.xlu0 %v161, %s265
    %v267 = vpop.permute.xlu0 %266
    %v268 = vlaneseq
    %v269 = vshrl.u32 %v268, 7
    %v270 = vsub.s32 2, %v269
    %v271 = vrot.slane %v120, %v270
    %v272 = vmul.f32 %v263, %v271
    %v273 = vmul.f32 %v267, %v271
    %v274 = vadd.f32 %v258, %v272
    %v275 = vadd.f32 %v259, %v273
    %s277 = sor.u32 256, 4
    %278 = vbcast.lane.b32.xlu0 %v177, %s277
    %v279 = vpop.permute.xlu0 %278
    %s281 = sor.u32 256, 4
    %282 = vbcast.lane.b32.xlu0 %v184, %s281
    %v283 = vpop.permute.xlu0 %282
    %v284 = vlaneseq
    %v285 = vshrl.u32 %v284, 7
    %v286 = vsub.s32 2, %v285
    %v287 = vrot.slane %v121, %v286
    %v288 = vmul.f32 %v279, %v287
    %v289 = vmul.f32 %v283, %v287
    %v290 = vadd.f32 %v274, %v288
    %v291 = vadd.f32 %v275, %v289
    %s293 = sor.u32 256, 6
    %294 = vbcast.lane.b32.xlu0 %v127, %s293
    %v295 = vpop.permute.xlu0 %294
    %s297 = sor.u32 256, 6
    %298 = vbcast.lane.b32.xlu0 %v134, %s297
    %v299 = vpop.permute.xlu0 %298
    %v300 = vlaneseq
    %v301 = vshrl.u32 %v300, 7
    %v302 = vsub.s32 3, %v301
    %v303 = vrot.slane %v119, %v302
    %v304 = vmul.f32 %v295, %v303
    %v305 = vmul.f32 %v299, %v303
    %v306 = vadd.f32 %v290, %v304
    %v307 = vadd.f32 %v291, %v305
    %s309 = sor.u32 256, 6
    %310 = vbcast.lane.b32.xlu0 %v154, %s309
    %v311 = vpop.permute.xlu0 %310
    %s313 = sor.u32 256, 6
    %314 = vbcast.lane.b32.xlu0 %v161, %s313
    %v315 = vpop.permute.xlu0 %314
    %v316 = vlaneseq
    %v317 = vshrl.u32 %v316, 7
    %v318 = vsub.s32 3, %v317
    %v319 = vrot.slane %v120, %v318
    %v320 = vmul.f32 %v311, %v319
    %v321 = vmul.f32 %v315, %v319
    %v322 = vadd.f32 %v306, %v320
    %v323 = vadd.f32 %v307, %v321
    %s325 = sor.u32 256, 6
    %326 = vbcast.lane.b32.xlu0 %v177, %s325
    %v327 = vpop.permute.xlu0 %326
    %s329 = sor.u32 256, 6
    %330 = vbcast.lane.b32.xlu0 %v184, %s329
    %v331 = vpop.permute.xlu0 %330
    %v332 = vlaneseq
    %v333 = vshrl.u32 %v332, 7
    %v334 = vsub.s32 3, %v333
    %v335 = vrot.slane %v121, %v334
    %v336 = vmul.f32 %v327, %v335
    %v337 = vmul.f32 %v331, %v335
    %v338 = vadd.f32 %v322, %v336
    %v339 = vadd.f32 %v323, %v337
    %v340 = vtanh.pop %v338
    %v341 = vtanh.pop %v339
    %v342 = vld [vmem:[#allocation10] sm:$0xff]
    %v343 = vld [vmem:[#allocation10 + $0x8] sm:$0xff]
    %v344 = vld [vmem:[#allocation10 + $0x10] sm:$0xff]
    %v345 = vld [vmem:[#allocation10 + $0x18] sm:$0xff]
    %v346 = vld [vmem:[#allocation10 + $0x20] sm:$0xff]
    %v347 = vld [vmem:[#allocation10 + $0x28] sm:$0xff]
    %v348 = vld [vmem:[#allocation10 + $0x30] sm:$0xff]
    %v349 = vld [vmem:[#allocation10 + $0x38] sm:$0xff]
    %v350 = vld [vmem:[#allocation10 + $0x40] sm:$0xff]
    %v351 = vld [vmem:[#allocation10 + $0x48] sm:$0xff]
    %v352 = vld [vmem:[#allocation10 + $0x50] sm:$0xff]
    %v353 = vld [vmem:[#allocation10 + $0x58] sm:$0xff]
    %v354 = vld [vmem:[#allocation10 + $0x60] sm:$0xff]
    %v355 = vld [vmem:[#allocation10 + $0x68] sm:$0xff]
    %v356 = vld [vmem:[#allocation10 + $0x70] sm:$0xff]
    %v357 = vld [vmem:[#allocation10 + $0x78] sm:$0xff]
    %v358 = vld [vmem:[%s11 + $0x1] sm:$0x1]
    %v359 = vlaneseq
    %v360 = vshrl.u32 %v359, 7
    %v361 = vsub.s32 0, %v360
    %v362 = vrot.slane %v358, %v361
    %v365 = vcombine.low %v340, %v341
    %v367 = vunpack.c.l.s4 1983009808
    %v368 = vunpack.c.0.s8 %v367
    %v369 = vlaneseq
    %v370 = vshrl.u32 %v369, 7
    %v371 = vsub.s32 %v368, %v370
    %v372 = vrot.slane %v365, %v371
    %374 = vmatprep.subr.mxu0 0.0
    %375 = vmatpush1.msra.mxu0 %v342
    %376 = vmatprep.subr.mxu0 0.0
    %377 = vmatpush1.msra.mxu0 %v343
    %378 = vmatprep.subr.mxu0 0.0
    %379 = vmatpush1.msra.mxu0 %v344
    %380 = vmatprep.subr.mxu0 0.0
    %381 = vmatpush1.msra.mxu0 %v345
    %382 = vmatprep.subr.mxu0 0.0
    %383 = vmatpush1.msra.mxu0 %v346
    %384 = vmatprep.subr.mxu0 0.0
    %385 = vmatpush1.msra.mxu0 %v347
    %386 = vmatprep.subr.mxu0 0.0
    %387 = vmatpush1.msra.mxu0 %v348
    %388 = vmatprep.subr.mxu0 0.0
    %389 = vmatpush1.msra.mxu0 %v349
    %390 = vmatprep.subr.mxu0 0.0
    %391 = vmatpush1.msra.mxu0 %v350
    %392 = vmatprep.subr.mxu0 0.0
    %393 = vmatpush1.msra.mxu0 %v351
    %394 = vmatprep.subr.mxu0 0.0
    %395 = vmatpush1.msra.mxu0 %v352
    %396 = vmatprep.subr.mxu0 0.0
    %397 = vmatpush1.msra.mxu0 %v353
    %398 = vmatprep.subr.mxu0 0.0
    %399 = vmatpush1.msra.mxu0 %v354
    %400 = vmatprep.subr.mxu0 0.0
    %401 = vmatpush1.msra.mxu0 %v355
    %402 = vmatprep.subr.mxu0 0.0
    %403 = vmatpush1.msra.mxu0 %v356
    %404 = vmatprep.subr.mxu0 0.0
    %405 = vmatpush1.msra.mxu0 %v357
    %406 = vmatprep.subr.mxu0 0.0
    %407 = vmatpush1.msra.mxu0 0.0
    %408 = vmatprep.subr.mxu0 0.0
    %409 = vmatpush1.msra.mxu0 0.0
    %410 = vmatprep.subr.mxu0 0.0
    %411 = vmatpush1.msra.mxu0 0.0
    %412 = vmatprep.subr.mxu0 0.0
    %413 = vmatpush1.msra.mxu0 0.0
    %414 = vmatprep.subr.mxu0 0.0
    %415 = vmatpush1.msra.mxu0 0.0
    %416 = vmatprep.subr.mxu0 0.0
    %417 = vmatpush1.msra.mxu0 0.0
    %418 = vmatprep.subr.mxu0 0.0
    %419 = vmatpush1.msra.mxu0 0.0
    %420 = vmatprep.subr.mxu0 0.0
    %421 = vmatpush1.msra.mxu0 0.0
    %422 = vmatprep.subr.mxu0 0.0
    %423 = vmatpush1.msra.mxu0 0.0
    %424 = vmatprep.subr.mxu0 0.0
    %425 = vmatpush1.msra.mxu0 0.0
    %426 = vmatprep.subr.mxu0 0.0
    %427 = vmatpush1.msra.mxu0 0.0
    %428 = vmatprep.subr.mxu0 0.0
    %429 = vmatpush1.msra.mxu0 0.0
    %430 = vmatprep.subr.mxu0 0.0
    %431 = vmatpush1.msra.mxu0 0.0
    %432 = vmatprep.subr.mxu0 0.0
    %433 = vmatpush1.msra.mxu0 0.0
    %434 = vmatprep.subr.mxu0 0.0
    %435 = vmatpush1.msra.mxu0 0.0
    %436 = vmatprep.subr.mxu0 0.0
    %437 = vmatpush1.msra.mxu0 0.0
    %438 = vmatprep.mubr.f32.mxu0 0.0
    %439 = vmatmul.mubr.f32.gmra.mrb[0].mxu0 %v372
    %v440 = vpop.f32.mrb[0].mxu0
    %v441 = vadd.f32 %v362, %v440
    %v442 = vpop.f32.mrb[0].mxu0
    %443 = vdwg.mxu0
    %v444 = vtanh.pop %v441
    %s445 = scalar_lea.vmem [#allocation10], 128
    %v446 = vld [vmem:[%s445] sm:$0xff]
    %v447 = vld [vmem:[%s445 + $0x8] sm:$0xff]
    %v448 = vld [vmem:[%s445 + $0x10] sm:$0xff]
    %v449 = vld [vmem:[%s445 + $0x18] sm:$0xff]
    %v450 = vld [vmem:[%s445 + $0x20] sm:$0xff]
    %v451 = vld [vmem:[%s445 + $0x28] sm:$0xff]
    %v452 = vld [vmem:[%s445 + $0x30] sm:$0xff]
    %v453 = vld [vmem:[%s445 + $0x38] sm:$0xff]
    %v454 = vld [vmem:[%s445 + $0x40] sm:$0xff]
    %v455 = vld [vmem:[%s445 + $0x48] sm:$0xff]
    %v456 = vld [vmem:[%s445 + $0x50] sm:$0xff]
    %v457 = vld [vmem:[%s445 + $0x58] sm:$0xff]
    %v458 = vld [vmem:[%s445 + $0x60] sm:$0xff]
    %v459 = vld [vmem:[%s445 + $0x68] sm:$0xff]
    %v460 = vld [vmem:[%s445 + $0x70] sm:$0xff]
    %v461 = vld [vmem:[%s445 + $0x78] sm:$0xff]
    %v462 = vld [vmem:[%s11 + $0x2] sm:$0x1]
    %v463 = vlaneseq
    %v464 = vshrl.u32 %v463, 7
    %v465 = vsub.s32 0, %v464
    %v466 = vrot.slane %v462, %v465
    %467 = vmatprep.subr.mxu0 0.0
    %468 = vmatpush1.msra.mxu0 %v446
    %469 = vmatprep.subr.mxu0 0.0
    %470 = vmatpush1.msra.mxu0 %v447
    %471 = vmatprep.subr.mxu0 0.0
    %472 = vmatpush1.msra.mxu0 %v448
    %473 = vmatprep.subr.mxu0 0.0
    %474 = vmatpush1.msra.mxu0 %v449
    %475 = vmatprep.subr.mxu0 0.0
    %476 = vmatpush1.msra.mxu0 %v450
    %477 = vmatprep.subr.mxu0 0.0
    %478 = vmatpush1.msra.mxu0 %v451
    %479 = vmatprep.subr.mxu0 0.0
    %480 = vmatpush1.msra.mxu0 %v452
    %481 = vmatprep.subr.mxu0 0.0
    %482 = vmatpush1.msra.mxu0 %v453
    %483 = vmatprep.subr.mxu0 0.0
    %484 = vmatpush1.msra.mxu0 %v454
    %485 = vmatprep.subr.mxu0 0.0
    %486 = vmatpush1.msra.mxu0 %v455
    %487 = vmatprep.subr.mxu0 0.0
    %488 = vmatpush1.msra.mxu0 %v456
    %489 = vmatprep.subr.mxu0 0.0
    %490 = vmatpush1.msra.mxu0 %v457
    %491 = vmatprep.subr.mxu0 0.0
    %492 = vmatpush1.msra.mxu0 %v458
    %493 = vmatprep.subr.mxu0 0.0
    %494 = vmatpush1.msra.mxu0 %v459
    %495 = vmatprep.subr.mxu0 0.0
    %496 = vmatpush1.msra.mxu0 %v460
    %497 = vmatprep.subr.mxu0 0.0
    %498 = vmatpush1.msra.mxu0 %v461
    %499 = vmatprep.subr.mxu0 0.0
    %500 = vmatpush1.msra.mxu0 0.0
    %501 = vmatprep.subr.mxu0 0.0
    %502 = vmatpush1.msra.mxu0 0.0
    %503 = vmatprep.subr.mxu0 0.0
    %504 = vmatpush1.msra.mxu0 0.0
    %505 = vmatprep.subr.mxu0 0.0
    %506 = vmatpush1.msra.mxu0 0.0
    %507 = vmatprep.subr.mxu0 0.0
    %508 = vmatpush1.msra.mxu0 0.0
    %509 = vmatprep.subr.mxu0 0.0
    %510 = vmatpush1.msra.mxu0 0.0
    %511 = vmatprep.subr.mxu0 0.0
    %512 = vmatpush1.msra.mxu0 0.0
    %513 = vmatprep.subr.mxu0 0.0
    %514 = vmatpush1.msra.mxu0 0.0
    %515 = vmatprep.subr.mxu0 0.0
    %516 = vmatpush1.msra.mxu0 0.0
    %517 = vmatprep.subr.mxu0 0.0
    %518 = vmatpush1.msra.mxu0 0.0
    %519 = vmatprep.subr.mxu0 0.0
    %520 = vmatpush1.msra.mxu0 0.0
    %521 = vmatprep.subr.mxu0 0.0
    %522 = vmatpush1.msra.mxu0 0.0
    %523 = vmatprep.subr.mxu0 0.0
    %524 = vmatpush1.msra.mxu0 0.0
    %525 = vmatprep.subr.mxu0 0.0
    %526 = vmatpush1.msra.mxu0 0.0
    %527 = vmatprep.subr.mxu0 0.0
    %528 = vmatpush1.msra.mxu0 0.0
    %529 = vmatprep.subr.mxu0 0.0
    %530 = vmatpush1.msra.mxu0 0.0
    %531 = vmatprep.mubr.f32.mxu0 0.0
    %532 = vmatmul.mubr.f32.gmra.mrb[0].mxu0 %v444
    %v533 = vpop.f32.mrb[0].mxu0
    %v534 = vadd.f32 %v466, %v533
    %v535 = vpop.f32.mrb[0].mxu0
    %536 = vdwg.mxu0
    %v539 = vunpack.c.l.s4 1983009808
    %v540 = vunpack.c.0.s8 %v539
    %v541 = vlaneseq
    %v542 = vshrl.u32 %v541, 7
    %v543 = vsub.s32 %v540, %v542
    %v544 = vrot.slane %v534, %v543
    %v545 = vcombine.high %v544, %v544
    %vm548 = vcmask 1041408
    %v549 = vsel %vm548, %v544, -inf
    %v550 = vrot.slane %v549, 4
    %v551 = vmax.f32 %v549, %v550
    %v552 = vrot.slane %v551, 2
    %v553 = vmax.f32 %v551, %v552
    %v554 = vrot.slane %v553, 1
    %v555 = vmax.f32 %v553, %v554
    %v556 = vsel %vm548, %v545, -inf
    %v557 = vrot.slane %v556, 4
    %v558 = vmax.f32 %v556, %v557
    %v559 = vrot.slane %v558, 2
    %v560 = vmax.f32 %v558, %v559
    %v561 = vrot.slane %v560, 1
    %v562 = vmax.f32 %v560, %v561
    %565 = vrot.lane.b32.xlu0 %v555, 64
    %v566 = vpop.permute.xlu0 %565
    %567 = vrot.lane.b32.xlu0 %v562, 64
    %v568 = vpop.permute.xlu0 %567
    %v571 = vmax.f32 %v555, %v566
    %v572 = vmax.f32 %v562, %v568
    %575 = vrot.lane.b32.xlu0 %v571, 96
    %v576 = vpop.permute.xlu0 %575
    %577 = vrot.lane.b32.xlu0 %v572, 96
    %v578 = vpop.permute.xlu0 %577
    %v581 = vmax.f32 %v571, %v576
    %v582 = vmax.f32 %v572, %v578
    %v583 = vld [vmem:[%s9] sm:$0xff]
    %v584 = vld [vmem:[%s9 + $0x8] sm:$0xff]
    %v585 = vld [vmem:[%s9 + $0x10] sm:$0xff]
    %v586 = vld [vmem:[%s9 + $0x18] sm:$0xff]
    %v589 = vrot.slane %v582, 7
    %vm590 = vcmask 1041409
    %v591 = vsel %vm590, %v589, %v581
    %vm592 = vcmask 261120
    %v593 = vsel %vm592, %v591, 0
    %595 = vmatprep.subr.mxu0 0.0
    %596 = vmatpush1.msra.mxu0 %v583
    %597 = vmatprep.subr.mxu0 0.0
    %598 = vmatpush1.msra.mxu0 %v584
    %599 = vmatprep.subr.mxu0 0.0
    %600 = vmatpush1.msra.mxu0 %v585
    %601 = vmatprep.subr.mxu0 0.0
    %602 = vmatpush1.msra.mxu0 %v586
    %603 = vmatprep.subr.mxu0 0.0
    %604 = vmatpush1.msra.mxu0 0.0
    %605 = vmatprep.subr.mxu0 0.0
    %606 = vmatpush1.msra.mxu0 0.0
    %607 = vmatprep.subr.mxu0 0.0
    %608 = vmatpush1.msra.mxu0 0.0
    %609 = vmatprep.subr.mxu0 0.0
    %610 = vmatpush1.msra.mxu0 0.0
    %611 = vmatprep.subr.mxu0 0.0
    %612 = vmatpush1.msra.mxu0 0.0
    %613 = vmatprep.subr.mxu0 0.0
    %614 = vmatpush1.msra.mxu0 0.0
    %615 = vmatprep.subr.mxu0 0.0
    %616 = vmatpush1.msra.mxu0 0.0
    %617 = vmatprep.subr.mxu0 0.0
    %618 = vmatpush1.msra.mxu0 0.0
    %619 = vmatprep.subr.mxu0 0.0
    %620 = vmatpush1.msra.mxu0 0.0
    %621 = vmatprep.subr.mxu0 0.0
    %622 = vmatpush1.msra.mxu0 0.0
    %623 = vmatprep.subr.mxu0 0.0
    %624 = vmatpush1.msra.mxu0 0.0
    %625 = vmatprep.subr.mxu0 0.0
    %626 = vmatpush1.msra.mxu0 0.0
    %627 = vmatprep.subr.mxu0 0.0
    %628 = vmatpush1.msra.mxu0 0.0
    %629 = vmatprep.subr.mxu0 0.0
    %630 = vmatpush1.msra.mxu0 0.0
    %631 = vmatprep.subr.mxu0 0.0
    %632 = vmatpush1.msra.mxu0 0.0
    %633 = vmatprep.subr.mxu0 0.0
    %634 = vmatpush1.msra.mxu0 0.0
    %635 = vmatprep.subr.mxu0 0.0
    %636 = vmatpush1.msra.mxu0 0.0
    %637 = vmatprep.subr.mxu0 0.0
    %638 = vmatpush1.msra.mxu0 0.0
    %639 = vmatprep.subr.mxu0 0.0
    %640 = vmatpush1.msra.mxu0 0.0
    %641 = vmatprep.subr.mxu0 0.0
    %642 = vmatpush1.msra.mxu0 0.0
    %643 = vmatprep.subr.mxu0 0.0
    %644 = vmatpush1.msra.mxu0 0.0
    %645 = vmatprep.subr.mxu0 0.0
    %646 = vmatpush1.msra.mxu0 0.0
    %647 = vmatprep.subr.mxu0 0.0
    %648 = vmatpush1.msra.mxu0 0.0
    %649 = vmatprep.subr.mxu0 0.0
    %650 = vmatpush1.msra.mxu0 0.0
    %651 = vmatprep.subr.mxu0 0.0
    %652 = vmatpush1.msra.mxu0 0.0
    %653 = vmatprep.subr.mxu0 0.0
    %654 = vmatpush1.msra.mxu0 0.0
    %655 = vmatprep.subr.mxu0 0.0
    %656 = vmatpush1.msra.mxu0 0.0
    %657 = vmatprep.subr.mxu0 0.0
    %658 = vmatpush1.msra.mxu0 0.0
    %659 = vmatprep.mubr.f32.mxu0 0.0
    %660 = vmatmul.mubr.f32.gmra.mrb[0].mxu0 %v593
    %v661 = vpop.f32.mrb[0].mxu0
    %v662 = vadd.f32 0.0, %v661
    %v663 = vpop.f32.mrb[0].mxu0
    %664 = vdwg.mxu0
    %v665 = vld [vmem:[%s10] sm:$0xff]
    %v666 = vld [vmem:[%s10 + $0x8] sm:$0xff]
    %v667 = vld [vmem:[%s10 + $0x10] sm:$0xff]
    %v668 = vld [vmem:[%s10 + $0x18] sm:$0xff]
    %669 = vmatprep.subr.mxu0 0.0
    %670 = vmatpush1.msra.mxu0 %v665
    %671 = vmatprep.subr.mxu0 0.0
    %672 = vmatpush1.msra.mxu0 %v666
    %673 = vmatprep.subr.mxu0 0.0
    %674 = vmatpush1.msra.mxu0 %v667
    %675 = vmatprep.subr.mxu0 0.0
    %676 = vmatpush1.msra.mxu0 %v668
    %677 = vmatprep.subr.mxu0 0.0
    %678 = vmatpush1.msra.mxu0 0.0
    %679 = vmatprep.subr.mxu0 0.0
    %680 = vmatpush1.msra.mxu0 0.0
    %681 = vmatprep.subr.mxu0 0.0
    %682 = vmatpush1.msra.mxu0 0.0
    %683 = vmatprep.subr.mxu0 0.0
    %684 = vmatpush1.msra.mxu0 0.0
    %685 = vmatprep.subr.mxu0 0.0
    %686 = vmatpush1.msra.mxu0 0.0
    %687 = vmatprep.subr.mxu0 0.0
    %688 = vmatpush1.msra.mxu0 0.0
    %689 = vmatprep.subr.mxu0 0.0
    %690 = vmatpush1.msra.mxu0 0.0
    %691 = vmatprep.subr.mxu0 0.0
    %692 = vmatpush1.msra.mxu0 0.0
    %693 = vmatprep.subr.mxu0 0.0
    %694 = vmatpush1.msra.mxu0 0.0
    %695 = vmatprep.subr.mxu0 0.0
    %696 = vmatpush1.msra.mxu0 0.0
    %697 = vmatprep.subr.mxu0 0.0
    %698 = vmatpush1.msra.mxu0 0.0
    %699 = vmatprep.subr.mxu0 0.0
    %700 = vmatpush1.msra.mxu0 0.0
    %701 = vmatprep.subr.mxu0 0.0
    %702 = vmatpush1.msra.mxu0 0.0
    %703 = vmatprep.subr.mxu0 0.0
    %704 = vmatpush1.msra.mxu0 0.0
    %705 = vmatprep.subr.mxu0 0.0
    %706 = vmatpush1.msra.mxu0 0.0
    %707 = vmatprep.subr.mxu0 0.0
    %708 = vmatpush1.msra.mxu0 0.0
    %709 = vmatprep.subr.mxu0 0.0
    %710 = vmatpush1.msra.mxu0 0.0
    %711 = vmatprep.subr.mxu0 0.0
    %712 = vmatpush1.msra.mxu0 0.0
    %713 = vmatprep.subr.mxu0 0.0
    %714 = vmatpush1.msra.mxu0 0.0
    %715 = vmatprep.subr.mxu0 0.0
    %716 = vmatpush1.msra.mxu0 0.0
    %717 = vmatprep.subr.mxu0 0.0
    %718 = vmatpush1.msra.mxu0 0.0
    %719 = vmatprep.subr.mxu0 0.0
    %720 = vmatpush1.msra.mxu0 0.0
    %721 = vmatprep.subr.mxu0 0.0
    %722 = vmatpush1.msra.mxu0 0.0
    %723 = vmatprep.subr.mxu0 0.0
    %724 = vmatpush1.msra.mxu0 0.0
    %725 = vmatprep.subr.mxu0 0.0
    %726 = vmatpush1.msra.mxu0 0.0
    %727 = vmatprep.subr.mxu0 0.0
    %728 = vmatpush1.msra.mxu0 0.0
    %729 = vmatprep.subr.mxu0 0.0
    %730 = vmatpush1.msra.mxu0 0.0
    %731 = vmatprep.subr.mxu0 0.0
    %732 = vmatpush1.msra.mxu0 0.0
    %733 = vmatprep.mubr.f32.mxu0 0.0
    %734 = vmatmul.mubr.f32.gmra.mrb[0].mxu0 %v593
    %v735 = vpop.f32.mrb[0].mxu0
    %v736 = vadd.f32 0.0, %v735
    %v737 = vpop.f32.mrb[0].mxu0
    %738 = vdwg.mxu0
    %740 = vrot.lane.b32.xlu0 %v591, 32
    %v741 = vpop.permute.xlu0 %740
    %743 = vrot.lane.b32.xlu0 %v591, 64
    %v744 = vpop.permute.xlu0 %743
    %746 = vrot.lane.b32.xlu0 %v591, 96
    %v747 = vpop.permute.xlu0 %746
    %v749 = vsel %vm592, %v591, %v741
    %vm750 = vcmask 523264
    %v751 = vsel %vm750, %v749, %v744
    %vm752 = vcmask 785408
    %v753 = vsel %vm752, %v751, %v747
    %v754 = vld [vmem:[%s7] sm:$0x3]
    %v755 = vld [vmem:[%s7 + $0x2] sm:$0x3]
    %v756 = vld [vmem:[%s11 + $0x3] sm:$0x1]
    %v757 = vld [vmem:[%s0] sm:$0x3]
    %v758 = vlaneseq
    %v759 = vshrl.u32 %v758, 7
    %v760 = vsub.s32 0, %v759
    %v761 = vrot.slane %v757, %v760
    %763 = vbcast.lane.b32.xlu0 %v761, 256
    %v764 = vpop.permute.xlu0 %763
    %v765 = vlaneseq
    %v766 = vshrl.u32 %v765, 7
    %v767 = vsub.s32 1, %v766
    %v768 = vrot.slane %v757, %v767
    %770 = vbcast.lane.b32.xlu0 %v768, 256
    %v771 = vpop.permute.xlu0 %770
    %v772 = vlaneseq
    %v773 = vshrl.u32 %v772, 7
    %v774 = vsub.s32 0, %v773
    %v775 = vrot.slane %v754, %v774
    %v776 = vmul.f32 %v764, %v775
    %v777 = vmul.f32 %v771, %v775
    %v778 = vlaneseq
    %v779 = vshrl.u32 %v778, 7
    %v780 = vsub.s32 0, %v779
    %v781 = vrot.slane %v756, %v780
    %v782 = vadd.f32 %v781, %v776
    %v783 = vadd.f32 %v781, %v777
    %v784 = vld [vmem:[#allocation2] sm:$0x3]
    %v785 = vlaneseq
    %v786 = vshrl.u32 %v785, 7
    %v787 = vsub.s32 0, %v786
    %v788 = vrot.slane %v784, %v787
    %790 = vbcast.lane.b32.xlu0 %v788, 256
    %v791 = vpop.permute.xlu0 %790
    %v792 = vlaneseq
    %v793 = vshrl.u32 %v792, 7
    %v794 = vsub.s32 1, %v793
    %v795 = vrot.slane %v784, %v794
    %797 = vbcast.lane.b32.xlu0 %v795, 256
    %v798 = vpop.permute.xlu0 %797
    %v799 = vlaneseq
    %v800 = vshrl.u32 %v799, 7
    %v801 = vsub.s32 0, %v800
    %v802 = vrot.slane %v755, %v801
    %v803 = vmul.f32 %v791, %v802
    %v804 = vmul.f32 %v798, %v802
    %v805 = vadd.f32 %v782, %v803
    %v806 = vadd.f32 %v783, %v804
    %s808 = sor.u32 256, 8
    %809 = vbcast.lane.b32.xlu0 %v761, %s808
    %v810 = vpop.permute.xlu0 %809
    %s812 = sor.u32 256, 8
    %813 = vbcast.lane.b32.xlu0 %v768, %s812
    %v814 = vpop.permute.xlu0 %813
    %v815 = vlaneseq
    %v816 = vshrl.u32 %v815, 7
    %v817 = vsub.s32 1, %v816
    %v818 = vrot.slane %v754, %v817
    %v819 = vmul.f32 %v810, %v818
    %v820 = vmul.f32 %v814, %v818
    %v821 = vadd.f32 %v805, %v819
    %v822 = vadd.f32 %v806, %v820
    %s824 = sor.u32 256, 8
    %825 = vbcast.lane.b32.xlu0 %v788, %s824
    %v826 = vpop.permute.xlu0 %825
    %s828 = sor.u32 256, 8
    %829 = vbcast.lane.b32.xlu0 %v795, %s828
    %v830 = vpop.permute.xlu0 %829
    %v831 = vlaneseq
    %v832 = vshrl.u32 %v831, 7
    %v833 = vsub.s32 1, %v832
    %v834 = vrot.slane %v755, %v833
    %v835 = vmul.f32 %v826, %v834
    %v836 = vmul.f32 %v830, %v834
    %v837 = vadd.f32 %v821, %v835
    %v838 = vadd.f32 %v822, %v836
    %v841 = vunpack.c.l.s4 1966171168
    %v842 = vunpack.c.0.s8 %v841
    %v843 = vlaneseq
    %v844 = vshrl.u32 %v843, 7
    %v845 = vsub.s32 %v842, %v844
    %v846 = vrot.slane %v753, %v845
    %v847 = vcombine.high %v846, %v846
    %v849 = vunpack.c.l.s4 1966171168
    %v850 = vunpack.c.0.s8 %v849
    %v851 = vlaneseq
    %v852 = vshrl.u32 %v851, 7
    %v853 = vsub.s32 %v850, %v852
    %v854 = vrot.slane %v846, %v853
    %v856 = vunpack.c.l.s4 1966171168
    %v857 = vunpack.c.0.s8 %v856
    %v858 = vlaneseq
    %v859 = vshrl.u32 %v858, 7
    %v860 = vsub.s32 %v857, %v859
    %v861 = vrot.slane %v847, %v860
    %v862 = vtanh.pop %v837
    %v863 = vtanh.pop %v838
    %v864 = vlaneseq
    %v865 = vshrl.u32 %v864, 7
    %v866 = vsub.s32 0, %v865
    %v867 = vrot.slane %v854, %v866
    %v868 = vlaneseq
    %v869 = vshrl.u32 %v868, 7
    %v870 = vsub.s32 0, %v869
    %v871 = vrot.slane %v861, %v870
    %v874 = vmul.f32 %v862, %v867
    %v875 = vmul.f32 %v863, %v871
    %v876 = vld [vmem:[#allocation11] sm:$0xff]
    %v877 = vld [vmem:[#allocation11 + $0x8] sm:$0xff]
    %v878 = vld [vmem:[#allocation11 + $0x10] sm:$0xff]
    %v879 = vld [vmem:[#allocation11 + $0x18] sm:$0xff]
    %v880 = vld [vmem:[#allocation11 + $0x20] sm:$0xff]
    %v881 = vld [vmem:[#allocation11 + $0x28] sm:$0xff]
    %v882 = vld [vmem:[#allocation11 + $0x30] sm:$0xff]
    %v883 = vld [vmem:[#allocation11 + $0x38] sm:$0xff]
    %v884 = vld [vmem:[#allocation11 + $0x40] sm:$0xff]
    %v885 = vld [vmem:[#allocation11 + $0x48] sm:$0xff]
    %v886 = vld [vmem:[#allocation11 + $0x50] sm:$0xff]
    %v887 = vld [vmem:[#allocation11 + $0x58] sm:$0xff]
    %v888 = vld [vmem:[#allocation11 + $0x60] sm:$0xff]
    %v889 = vld [vmem:[#allocation11 + $0x68] sm:$0xff]
    %v890 = vld [vmem:[#allocation11 + $0x70] sm:$0xff]
    %v891 = vld [vmem:[#allocation11 + $0x78] sm:$0xff]
    %v892 = vld [vmem:[%s11 + $0x4] sm:$0x1]
    %v893 = vlaneseq
    %v894 = vshrl.u32 %v893, 7
    %v895 = vsub.s32 0, %v894
    %v896 = vrot.slane %v892, %v895
    %897 = vmatprep.subr.mxu0 0.0
    %898 = vmatpush1.msra.mxu0 %v876
    %899 = vmatprep.subr.mxu0 0.0
    %900 = vmatpush1.msra.mxu0 %v877
    %901 = vmatprep.subr.mxu0 0.0
    %902 = vmatpush1.msra.mxu0 %v878
    %903 = vmatprep.subr.mxu0 0.0
    %904 = vmatpush1.msra.mxu0 %v879
    %905 = vmatprep.subr.mxu0 0.0
    %906 = vmatpush1.msra.mxu0 %v880
    %907 = vmatprep.subr.mxu0 0.0
    %908 = vmatpush1.msra.mxu0 %v881
    %909 = vmatprep.subr.mxu0 0.0
    %910 = vmatpush1.msra.mxu0 %v882
    %911 = vmatprep.subr.mxu0 0.0
    %912 = vmatpush1.msra.mxu0 %v883
    %913 = vmatprep.subr.mxu0 0.0
    %914 = vmatpush1.msra.mxu0 %v884
    %915 = vmatprep.subr.mxu0 0.0
    %916 = vmatpush1.msra.mxu0 %v885
    %917 = vmatprep.subr.mxu0 0.0
    %918 = vmatpush1.msra.mxu0 %v886
    %919 = vmatprep.subr.mxu0 0.0
    %920 = vmatpush1.msra.mxu0 %v887
    %921 = vmatprep.subr.mxu0 0.0
    %922 = vmatpush1.msra.mxu0 %v888
    %923 = vmatprep.subr.mxu0 0.0
    %924 = vmatpush1.msra.mxu0 %v889
    %925 = vmatprep.subr.mxu0 0.0
    %926 = vmatpush1.msra.mxu0 %v890
    %927 = vmatprep.subr.mxu0 0.0
    %928 = vmatpush1.msra.mxu0 %v891
    %929 = vmatprep.subr.mxu0 0.0
    %930 = vmatpush1.msra.mxu0 0.0
    %931 = vmatprep.subr.mxu0 0.0
    %932 = vmatpush1.msra.mxu0 0.0
    %933 = vmatprep.subr.mxu0 0.0
    %934 = vmatpush1.msra.mxu0 0.0
    %935 = vmatprep.subr.mxu0 0.0
    %936 = vmatpush1.msra.mxu0 0.0
    %937 = vmatprep.subr.mxu0 0.0
    %938 = vmatpush1.msra.mxu0 0.0
    %939 = vmatprep.subr.mxu0 0.0
    %940 = vmatpush1.msra.mxu0 0.0
    %941 = vmatprep.subr.mxu0 0.0
    %942 = vmatpush1.msra.mxu0 0.0
    %943 = vmatprep.subr.mxu0 0.0
    %944 = vmatpush1.msra.mxu0 0.0
    %945 = vmatprep.subr.mxu0 0.0
    %946 = vmatpush1.msra.mxu0 0.0
    %947 = vmatprep.subr.mxu0 0.0
    %948 = vmatpush1.msra.mxu0 0.0
    %949 = vmatprep.subr.mxu0 0.0
    %950 = vmatpush1.msra.mxu0 0.0
    %951 = vmatprep.subr.mxu0 0.0
    %952 = vmatpush1.msra.mxu0 0.0
    %953 = vmatprep.subr.mxu0 0.0
    %954 = vmatpush1.msra.mxu0 0.0
    %955 = vmatprep.subr.mxu0 0.0
    %956 = vmatpush1.msra.mxu0 0.0
    %957 = vmatprep.subr.mxu0 0.0
    %958 = vmatpush1.msra.mxu0 0.0
    %959 = vmatprep.subr.mxu0 0.0
    %960 = vmatpush1.msra.mxu0 0.0
    %961 = vmatprep.mubr.f32.mxu0 0.0
    %962 = vmatmul.mubr.f32.gmra.mrb[0].mxu0 %v874
    %v963 = vpop.f32.mrb[0].mxu0
    %v964 = vadd.f32 %v896, %v963
    %v965 = vpop.f32.mrb[0].mxu0
    %966 = vmatprep.mubr.f32.mxu0 0.0
    %967 = vmatmul.mubr.f32.gmra.mrb[0].mxu0 %v875
    %v968 = vpop.f32.mrb[0].mxu0
    %v969 = vadd.f32 %v896, %v968
    %v970 = vpop.f32.mrb[0].mxu0
    %971 = vdwg.mxu0
    %v972 = vtanh.pop %v964
    %v973 = vtanh.pop %v969
    %v974 = vmul.f32 %v972, %v867
    %v975 = vmul.f32 %v973, %v871
    %v978 = vunpack.c.l.s4 1966171168
    %v979 = vunpack.c.0.s8 %v978
    %v980 = vlaneseq
    %v981 = vshrl.u32 %v980, 7
    %v982 = vsub.s32 %v979, %v981
    %v983 = vrot.slane %v662, %v982
    %v984 = vcombine.high %v983, %v983
    %v986 = vunpack.c.l.s4 1966171168
    %v987 = vunpack.c.0.s8 %v986
    %v988 = vlaneseq
    %v989 = vshrl.u32 %v988, 7
    %v990 = vsub.s32 %v987, %v989
    %v991 = vrot.slane %v983, %v990
    %v993 = vunpack.c.l.s4 1966171168
    %v994 = vunpack.c.0.s8 %v993
    %v995 = vlaneseq
    %v996 = vshrl.u32 %v995, 7
    %v997 = vsub.s32 %v994, %v996
    %v998 = vrot.slane %v984, %v997
    %v999 = vld [vmem:[%s12] sm:$0xf]
    %v1000 = vlaneseq
    %v1001 = vshrl.u32 %v1000, 7
    %v1002 = vsub.s32 0, %v1001
    %v1003 = vrot.slane %v991, %v1002
    %v1004 = vlaneseq
    %v1005 = vshrl.u32 %v1004, 7
    %v1006 = vsub.s32 0, %v1005
    %v1007 = vrot.slane %v998, %v1006
    %v1010 = vmul.f32 %v1003, %v999
    %v1011 = vmul.f32 %v1007, %v999
    %v1012 = vlaneseq
    %v1013 = vshrl.u32 %v1012, 7
    %v1014 = vsub.s32 0, %v1013
    %v1015 = vrot.slane %v736, %v1014
    %1017 = vbcast.lane.b32.xlu0 %v1015, 256
    %v1018 = vpop.permute.xlu0 %1017
    %v1019 = vlaneseq
    %v1020 = vshrl.u32 %v1019, 7
    %v1021 = vsub.s32 1, %v1020
    %v1022 = vrot.slane %v736, %v1021
    %1024 = vbcast.lane.b32.xlu0 %v1022, 256
    %v1025 = vpop.permute.xlu0 %1024
    %1026 = vmatprep.subr.mxu0 0.0
    %1027 = vmatpush1.xpose.msra.mxu0 %v974
    %1028 = vmatprep.subr.mxu0 0.0
    %1029 = vmatpush1.xpose.msra.mxu0 0.0
    %1030 = vmatprep.subr.mxu0 0.0
    %1031 = vmatpush1.xpose.msra.mxu0 0.0
    %1032 = vmatprep.subr.mxu0 0.0
    %1033 = vmatpush1.xpose.msra.mxu0 0.0
    %1034 = vmatprep.subr.mxu0 0.0
    %1035 = vmatpush1.xpose.msra.mxu0 0.0
    %1036 = vmatprep.subr.mxu0 0.0
    %1037 = vmatpush1.xpose.msra.mxu0 0.0
    %1038 = vmatprep.subr.mxu0 0.0
    %1039 = vmatpush1.xpose.msra.mxu0 0.0
    %1040 = vmatprep.subr.mxu0 0.0
    %1041 = vmatpush1.xpose.msra.mxu0 0.0
    %1042 = vmatprep.subr.mxu0 0.0
    %1043 = vmatpush1.xpose.msra.mxu0 0.0
    %1044 = vmatprep.subr.mxu0 0.0
    %1045 = vmatpush1.xpose.msra.mxu0 0.0
    %1046 = vmatprep.subr.mxu0 0.0
    %1047 = vmatpush1.xpose.msra.mxu0 0.0
    %1048 = vmatprep.subr.mxu0 0.0
    %1049 = vmatpush1.xpose.msra.mxu0 0.0
    %1050 = vmatprep.subr.mxu0 0.0
    %1051 = vmatpush1.xpose.msra.mxu0 0.0
    %1052 = vmatprep.subr.mxu0 0.0
    %1053 = vmatpush1.xpose.msra.mxu0 0.0
    %1054 = vmatprep.subr.mxu0 0.0
    %1055 = vmatpush1.xpose.msra.mxu0 0.0
    %1056 = vmatprep.subr.mxu0 0.0
    %1057 = vmatpush1.xpose.msra.mxu0 0.0
    %1058 = vmatprep.subr.mxu0 0.0
    %1059 = vmatpush1.xpose.msra.mxu0 0.0
    %1060 = vmatprep.subr.mxu0 0.0
    %1061 = vmatpush1.xpose.msra.mxu0 0.0
    %1062 = vmatprep.subr.mxu0 0.0
    %1063 = vmatpush1.xpose.msra.mxu0 0.0
    %1064 = vmatprep.subr.mxu0 0.0
    %1065 = vmatpush1.xpose.msra.mxu0 0.0
    %1066 = vmatprep.subr.mxu0 0.0
    %1067 = vmatpush1.xpose.msra.mxu0 0.0
    %1068 = vmatprep.subr.mxu0 0.0
    %1069 = vmatpush1.xpose.msra.mxu0 0.0
    %1070 = vmatprep.subr.mxu0 0.0
    %1071 = vmatpush1.xpose.msra.mxu0 0.0
    %1072 = vmatprep.subr.mxu0 0.0
    %1073 = vmatpush1.xpose.msra.mxu0 0.0
    %1074 = vmatprep.subr.mxu0 0.0
    %1075 = vmatpush1.xpose.msra.mxu0 0.0
    %1076 = vmatprep.subr.mxu0 0.0
    %1077 = vmatpush1.xpose.msra.mxu0 0.0
    %1078 = vmatprep.subr.mxu0 0.0
    %1079 = vmatpush1.xpose.msra.mxu0 0.0
    %1080 = vmatprep.subr.mxu0 0.0
    %1081 = vmatpush1.xpose.msra.mxu0 0.0
    %1082 = vmatprep.subr.mxu0 0.0
    %1083 = vmatpush1.xpose.msra.mxu0 0.0
    %1084 = vmatprep.subr.mxu0 0.0
    %1085 = vmatpush1.xpose.msra.mxu0 0.0
    %1086 = vmatprep.subr.mxu0 0.0
    %1087 = vmatpush1.xpose.msra.mxu0 0.0
    %1088 = vmatprep.subr.mxu0 0.0
    %1089 = vmatpush1.xpose.msra.mxu0 0.0
    %1090 = vmatprep.mubr.f32.mxu0 0.0
    %1091 = vmatmul.mubr.f32.gmra.mrb[0].mxu0 %v1010
    %v1092 = vpop.f32.mrb[0].mxu0
    %v1093 = vadd.f32 %v1018, %v1092
    %v1094 = vpop.f32.mrb[0].mxu0
    %1095 = vdwg.mxu0
    %1096 = vmatprep.subr.mxu0 0.0
    %1097 = vmatpush1.xpose.msra.mxu0 %v975
    %1098 = vmatprep.subr.mxu0 0.0
    %1099 = vmatpush1.xpose.msra.mxu0 0.0
    %1100 = vmatprep.subr.mxu0 0.0
    %1101 = vmatpush1.xpose.msra.mxu0 0.0
    %1102 = vmatprep.subr.mxu0 0.0
    %1103 = vmatpush1.xpose.msra.mxu0 0.0
    %1104 = vmatprep.subr.mxu0 0.0
    %1105 = vmatpush1.xpose.msra.mxu0 0.0
    %1106 = vmatprep.subr.mxu0 0.0
    %1107 = vmatpush1.xpose.msra.mxu0 0.0
    %1108 = vmatprep.subr.mxu0 0.0
    %1109 = vmatpush1.xpose.msra.mxu0 0.0
    %1110 = vmatprep.subr.mxu0 0.0
    %1111 = vmatpush1.xpose.msra.mxu0 0.0
    %1112 = vmatprep.subr.mxu0 0.0
    %1113 = vmatpush1.xpose.msra.mxu0 0.0
    %1114 = vmatprep.subr.mxu0 0.0
    %1115 = vmatpush1.xpose.msra.mxu0 0.0
    %1116 = vmatprep.subr.mxu0 0.0
    %1117 = vmatpush1.xpose.msra.mxu0 0.0
    %1118 = vmatprep.subr.mxu0 0.0
    %1119 = vmatpush1.xpose.msra.mxu0 0.0
    %1120 = vmatprep.subr.mxu0 0.0
    %1121 = vmatpush1.xpose.msra.mxu0 0.0
    %1122 = vmatprep.subr.mxu0 0.0
    %1123 = vmatpush1.xpose.msra.mxu0 0.0
    %1124 = vmatprep.subr.mxu0 0.0
    %1125 = vmatpush1.xpose.msra.mxu0 0.0
    %1126 = vmatprep.subr.mxu0 0.0
    %1127 = vmatpush1.xpose.msra.mxu0 0.0
    %1128 = vmatprep.subr.mxu0 0.0
    %1129 = vmatpush1.xpose.msra.mxu0 0.0
    %1130 = vmatprep.subr.mxu0 0.0
    %1131 = vmatpush1.xpose.msra.mxu0 0.0
    %1132 = vmatprep.subr.mxu0 0.0
    %1133 = vmatpush1.xpose.msra.mxu0 0.0
    %1134 = vmatprep.subr.mxu0 0.0
    %1135 = vmatpush1.xpose.msra.mxu0 0.0
    %1136 = vmatprep.subr.mxu0 0.0
    %1137 = vmatpush1.xpose.msra.mxu0 0.0
    %1138 = vmatprep.subr.mxu0 0.0
    %1139 = vmatpush1.xpose.msra.mxu0 0.0
    %1140 = vmatprep.subr.mxu0 0.0
    %1141 = vmatpush1.xpose.msra.mxu0 0.0
    %1142 = vmatprep.subr.mxu0 0.0
    %1143 = vmatpush1.xpose.msra.mxu0 0.0
    %1144 = vmatprep.subr.mxu0 0.0
    %1145 = vmatpush1.xpose.msra.mxu0 0.0
    %1146 = vmatprep.subr.mxu0 0.0
    %1147 = vmatpush1.xpose.msra.mxu0 0.0
    %1148 = vmatprep.subr.mxu0 0.0
    %1149 = vmatpush1.xpose.msra.mxu0 0.0
    %1150 = vmatprep.subr.mxu0 0.0
    %1151 = vmatpush1.xpose.msra.mxu0 0.0
    %1152 = vmatprep.subr.mxu0 0.0
    %1153 = vmatpush1.xpose.msra.mxu0 0.0
    %1154 = vmatprep.subr.mxu0 0.0
    %1155 = vmatpush1.xpose.msra.mxu0 0.0
    %1156 = vmatprep.subr.mxu0 0.0
    %1157 = vmatpush1.xpose.msra.mxu0 0.0
    %1158 = vmatprep.subr.mxu0 0.0
    %1159 = vmatpush1.xpose.msra.mxu0 0.0
    %1160 = vmatprep.mubr.f32.mxu0 0.0
    %1161 = vmatmul.mubr.f32.gmra.mrb[0].mxu0 %v1011
    %v1162 = vpop.f32.mrb[0].mxu0
    %v1163 = vadd.f32 %v1025, %v1162
    %v1164 = vpop.f32.mrb[0].mxu0
    %1165 = vdwg.mxu0
    %vm1166 = vcmask 60416
    %1167 = vst.msk [vmem:[#allocation13] sm:$0xf] %vm1166, %v1093
    %1168 = vst.msk [vmem:[#allocation13 + $0x4] sm:$0xf] %vm1166, %v1163
    // Predicated region
    $region78: #{tpu_custom_call.1} parent=1 // pred_check
      _
    $region79: #{tpu_custom_call.1} parent=1 // pred_check_branch
      %1170 = sbr.rel (0) target = $region81
    $region80: #{tpu_custom_call.1} parent=1 // pred_region
      %s1172 = ssub.s32 128, 128
      %1173 = vsyncadd [#allocation4], %s1172
      %s1174 = sshll.u32 [#allocation13], 4
      %s1175 = int_to_ptr.vmem [resolvable:$true] %s1174
      %1180 = dma.vmem_to_hbm [thread:$0]  %s1175, 128, %s13, [#allocation4], 64, 64, 4
    $region81: #{tpu_custom_call.1} parent=1 // pred_fallthru
      _
    // Predicated region
    $region82: #{tpu_custom_call.1} parent=1 // pred_check
      _
    $region83: #{tpu_custom_call.1} parent=1 // pred_check_branch
      %1182 = sbr.rel (0) target = $region85
    $region84: #{tpu_custom_call.1} parent=1 // pred_region
      %1183 = dma.done [#allocation4], 128
    $region85: #{tpu_custom_call.1} parent=1 // pred_fallthru
      _
    %1184 = vsyncpa [#allocation3], 1
    %1185 = vsyncpa [#allocation6], 1
    %1186 = vsyncpa [#allocation9], 1
    %1187 = vsyncpa [#allocation12], 1
    %1188 = vsyncpa [#allocation4], 1

</llo_original>
